<compile_context>
chip_gen: v7x
topology: tpu7x:2x2x1
jax: 0.10.0
libtpu: 0.0.40
codegen_flags: <defaults>
</compile_context>

<pallas_src>
import functools

import jax
import jax.numpy as jnp
from jax.experimental import pallas as pl
from jax.experimental.pallas import tpu as pltpu


# --------------------------------------------------------------------------- #
# Hardware probes (safe fallbacks if the query API is unavailable).           #
# --------------------------------------------------------------------------- #
def _vmem_capacity_bytes():
    try:
        return int(pltpu.get_tpu_info().vmem_capacity_bytes)
    except Exception:
        return 128 * 1024 * 1024


def _bf16_elementwise_ok():
    # v6e / v7x have bf16 VPU/EUP paths; v5e (and older) do not.
    try:
        kind = jax.devices()[0].device_kind.lower()
    except Exception:
        return False
    return ("v6" in kind) or ("v7" in kind)


# --------------------------------------------------------------------------- #
# Tiling derivation: ~2 MiB vis DMA blocks, VMEM-footprint bounded, >=2 batch  #
# grid steps for megacore.                                                     #
# --------------------------------------------------------------------------- #
def _derive_tiling(B, L, F, A, itemsize, vmem_limit, target_block, l_chunk):
    l_pad8 = -(-L // 8) * 8                       # sublane-align L

    if l_chunk is not None:
        lc = min(max(8, -(-l_chunk // 8) * 8), l_pad8)
    else:
        row_bytes = l_pad8 * F * itemsize         # one batch row, full L
        if row_bytes <= target_block:
            lc = l_pad8                           # full L fits the DMA budget
        else:
            lc = max(8, (target_block // (F * itemsize)) // 8 * 8)
            lc = min(lc, l_pad8)
    l_pad = -(-l_pad8 // lc) * lc                 # pad L to a whole chunk count

    # Batch rows per step so the vis block sits near the DMA sweet spot (1-4 MiB).
    tb = max(1, int(target_block // (lc * F * itemsize)))
    tb = min(tb, B)

    def footprint(tb_):
        vis = 2 * tb_ * lc * F * itemsize                 # double-buffered vis block
        tmp = 2 * tb_ * lc * A * 4                        # f32 f_proj / e temporaries
        wts = 2 * (F * A * itemsize + A * 4)              # w2t + v (conservatively x2)
        scr = tb_ * (l_pad + F + 2) * 4                   # scores / acc / m / l scratch
        io = 2 * tb_ * (F + l_pad + A) * 4                # ctx / attn / q_proj blocks
        return vis + tmp + wts + scr + io

    budget = int(0.6 * vmem_limit)
    while tb > 1 and footprint(tb) > budget:
        tb = max(1, tb // 2)

    # Keep >= 2 batch grid steps when possible so megacore (v7x) splits the grid.
    while tb > 1 and -(-B // tb) < 2:
        tb = max(1, tb // 2)

    b_pad = -(-B // tb) * tb
    return tb, lc, b_pad, l_pad


# --------------------------------------------------------------------------- #
# Kernel: grid = (batch tiles [parallel], L chunks [arbitrary, innermost]).    #
# --------------------------------------------------------------------------- #
def bahdanau_kernel(qp_ref, vis_ref, w2t_ref, v_ref, ctx_ref, attn_ref,
                    m_sc, l_sc, acc_sc, scores_sc, *, true_l, l_pad, ew_dtype):
    li = pl.program_id(1)
    n_l = pl.num_programs(1)
    tb, lc, f = vis_ref.shape
    a = w2t_ref.shape[1]
    n_lc = scores_sc.shape[0]                     # static chunk count

    @pl.when(li == 0)
    def _():
        m_sc[...] = jnp.full_like(m_sc, -1e30)
        l_sc[...] = jnp.zeros_like(l_sc)
        acc_sc[...] = jnp.zeros_like(acc_sc)

    vis = vis_ref[...]                            # (tb, lc, F), f32 or bf16

    # W2(visual_features) chunk: one big-M (tb*lc, F) @ (F, A) MXU pass, f32 acc.
    f_proj = jnp.dot(vis.reshape(tb * lc, f), w2t_ref[...],
                     preferred_element_type=jnp.float32).reshape(tb, lc, a)

    # tanh(W1 q + W2 x) and the v-score; bf16 elementwise on chips with bf16
    # VPU/EUP (v6e/v7x), f32 elsewhere.  Reductions stay f32.
    pre = (qp_ref[...].astype(jnp.float32) + f_proj).astype(ew_dtype)
    e = jnp.tanh(pre)                                               # (tb, lc, A)
    scores = jnp.sum((e * v_ref[...].astype(ew_dtype)).astype(jnp.float32),
                     axis=-1)                                       # (tb, lc) f32

    # Mask padded sequence positions (static no-op when L is chunk-aligned).
    if l_pad > true_l:
        pos = li * lc + jax.lax.broadcasted_iota(jnp.int32, (tb, lc), 1)
        scores = jnp.where(pos < true_l, scores, -1e30)

    scores_sc[li] = scores                        # raw scores for the attn output

    # Online-softmax update + unnormalized context accumulation.  The context
    # uses a VPU broadcast-multiply + sublane-L reduction on the resident vis
    # vregs (f32 attn, no M=1 MXU matmul competing with the next f_proj pass).
    m_prev = m_sc[...]
    m_new = jnp.maximum(m_prev, jnp.max(scores, axis=-1, keepdims=True))
    alpha = jnp.exp(m_prev - m_new)                                 # (tb, 1)
    p = jnp.exp(scores - m_new)                                     # (tb, lc)
    l_sc[...] = alpha * l_sc[...] + jnp.sum(p, axis=-1, keepdims=True)
    acc_sc[...] = alpha * acc_sc[...] + jnp.sum(
        p[:, :, None] * vis.astype(jnp.float32), axis=1)            # (tb, F)
    m_sc[...] = m_new

    @pl.when(li == n_l - 1)
    def _():
        inv_l = pl.reciprocal(l_sc[...], approx=True)               # EUP slot
        m_fin = m_sc[...]
        # Static (unrolled) gather of the per-chunk scores -> one lane-dense store.
        scores_full = jnp.concatenate([scores_sc[j] for j in range(n_lc)], axis=-1)
        attn = jnp.exp(scores_full - m_fin) * inv_l                 # (tb, l_pad)
        attn_ref[...] = attn[:, None, :].astype(attn_ref.dtype)
        ctx_ref[...] = (acc_sc[...] * inv_l)[:, None, :].astype(ctx_ref.dtype)


# --------------------------------------------------------------------------- #
# Wrapper.                                                                     #
# --------------------------------------------------------------------------- #
def bahdanau_attention(query, visual_features, w1, w2, v, *,
                       l_chunk=None, target_block_bytes=2 * 1024 * 1024):
    """query: (B, 1, H) f32; visual_features: (B, L, F) f32 or bf16 (pass bf16 to
    halve the dominant HBM traffic; accumulation stays f32);
    w1: (A, H), w2: (A, F), v: (1, A)   (PyTorch Linear layout, out x in)."""
    B, _, H = query.shape
    Bv, L, F = visual_features.shape
    A = w1.shape[0]
    assert Bv == B

    feat_dtype = visual_features.dtype
    itemsize = jnp.dtype(feat_dtype).itemsize

    # Generation-aware VMEM limit: ~96 MiB on 128 MiB parts (v5e/v6e),
    # ~48 MiB on v7x (64 MiB/TC).
    vmem_cap = max(_vmem_capacity_bytes(), 32 * 1024 * 1024)
    vmem_limit = min(int(0.75 * vmem_cap), 100 * 1024 * 1024)

    tb, lc, b_pad, l_pad = _derive_tiling(B, L, F, A, itemsize, vmem_limit,
                                          target_block_bytes, l_chunk)
    n_lc = l_pad // lc
    grid_b = b_pad // tb

    # Hoisted W1(query): one (B, H) @ (H, A) f32 XLA matmul.
    q_proj = jnp.dot(query[:, 0, :].astype(jnp.float32),
                     jnp.asarray(w1, jnp.float32).T).reshape(B, 1, A)

    # Pad batch / sequence up to the tile grid (padded rows are dropped below;
    # padded L positions are masked to -inf inside the kernel).
    if b_pad != B:
        q_proj = jnp.pad(q_proj, ((0, b_pad - B), (0, 0), (0, 0)))
    vis = visual_features
    if b_pad != B or l_pad != L:
        vis = jnp.pad(vis, ((0, b_pad - B), (0, l_pad - L), (0, 0)))

    w2t = jnp.asarray(w2).astype(feat_dtype).T                      # (F, A)
    v_row = jnp.asarray(v, jnp.float32)                             # (1, A)

    ew_dtype = (jnp.bfloat16
                if (feat_dtype == jnp.bfloat16 and _bf16_elementwise_ok())
                else jnp.float32)

    kernel = functools.partial(bahdanau_kernel, true_l=L, l_pad=l_pad,
                               ew_dtype=ew_dtype)

    ctx3, attn3 = pl.pallas_call(
        kernel,
        out_shape=(
            jax.ShapeDtypeStruct((b_pad, 1, F), jnp.float32),       # context
            jax.ShapeDtypeStruct((b_pad, 1, l_pad), jnp.float32),   # attn, lane-dense
        ),
        grid_spec=pltpu.PrefetchScalarGridSpec(
            num_scalar_prefetch=0,
            grid=(grid_b, n_lc),
            in_specs=[
                pl.BlockSpec((tb, 1, A), lambda b, l: (b, 0, 0)),   # hoisted q_proj
                pl.BlockSpec((tb, lc, F), lambda b, l: (b, l, 0)),  # vis chunk
                # Grid-invariant weights (constant index_map -> no re-DMA per step).
                pl.BlockSpec((F, A), lambda b, l: (0, 0)),          # W2^T
                pl.BlockSpec((1, A), lambda b, l: (0, 0)),          # v row
            ],
            out_specs=[
                pl.BlockSpec((tb, 1, F), lambda b, l: (b, 0, 0)),
                pl.BlockSpec((tb, 1, l_pad), lambda b, l: (b, 0, 0)),
            ],
            scratch_shapes=[
                pltpu.VMEM((tb, 1), jnp.float32),                   # running max
                pltpu.VMEM((tb, 1), jnp.float32),                   # running denom
                pltpu.VMEM((tb, F), jnp.float32),                   # unnormalized ctx
                pltpu.VMEM((n_lc, tb, lc), jnp.float32),            # raw scores
            ],
        ),
        compiler_params=pltpu.CompilerParams(
            dimension_semantics=("parallel", "arbitrary"),          # batch x L-chunks
            vmem_limit_bytes=vmem_limit,
        ),
    )(q_proj, vis, w2t, v_row)

    context_vector = ctx3[:B, 0, :]                                 # (B, F)
    attn_weights = jnp.swapaxes(attn3[:B, :, :L], 1, 2)             # (B, L, 1)
    return context_vector, attn_weights


# --------------------------------------------------------------------------- #
# Pure-JAX reference (mirrors the PyTorch module).                             #
# --------------------------------------------------------------------------- #
def _reference(query, visual_features, w1, w2, v):
    qp = jnp.einsum('bqh,ah->bqa', query, w1)                       # W1(query)
    fp = jnp.einsum('blf,af->bla', visual_features, w2)             # W2(vis)
    scores = jnp.einsum('bla,oa->blo', jnp.tanh(qp + fp), v)        # (B, L, 1)
    attn = jax.nn.softmax(scores, axis=1)
    ctx = jnp.sum(attn * visual_features, axis=1)
    return ctx, attn


if __name__ == "__main__":
    H, F, A = 32, 16, 32   # hidden_dim, features_dim, att_units

    key = jax.random.PRNGKey(0)
    kq, kv, k1, k2, k3 = jax.random.split(key, 5)

    w1 = 0.1 * jax.random.normal(k1, (A, H), dtype=jnp.float32)
    w2 = 0.1 * jax.random.normal(k2, (A, F), dtype=jnp.float32)
    v = 0.1 * jax.random.normal(k3, (1, A), dtype=jnp.float32)

    # ----- Config A: B=16, L=16 (tile-aligned) --------------------------------
    B, L = 16, 16
    query = jax.random.normal(kq, (B, 1, H), dtype=jnp.float32)
    visual_features = jax.random.normal(kv, (B, L, F), dtype=jnp.float32)
    ctx_ref, attn_ref = _reference(query, visual_features, w1, w2, v)

    # 1) derived tiling (single L chunk at these tiny shapes), f32 features
    ctx, attn = bahdanau_attention(query, visual_features, w1, w2, v)
    jax.block_until_ready((ctx, attn))
    assert ctx.shape == (B, F) and attn.shape == (B, L, 1)
    assert jnp.allclose(ctx, ctx_ref, atol=2e-3, rtol=2e-3)
    assert jnp.allclose(attn, attn_ref, atol=2e-3, rtol=2e-3)

    # 2) forced L chunking (exercises the online-softmax "arbitrary" axis)
    ctx_c, attn_c = bahdanau_attention(query, visual_features, w1, w2, v, l_chunk=8)
    jax.block_until_ready((ctx_c, attn_c))
    assert jnp.allclose(ctx_c, ctx_ref, atol=2e-3, rtol=2e-3)
    assert jnp.allclose(attn_c, attn_ref, atol=2e-3, rtol=2e-3)

    # 3) bf16 feature slab (halves the dominant HBM traffic; f32 accumulation)
    ctx_bf, attn_bf = bahdanau_attention(
        query, visual_features.astype(jnp.bfloat16), w1, w2, v, l_chunk=8)
    jax.block_until_ready((ctx_bf, attn_bf))
    assert jnp.allclose(ctx_bf, ctx_ref, atol=3e-2, rtol=3e-2)
    assert jnp.allclose(attn_bf, attn_ref, atol=3e-2, rtol=3e-2)

    # ----- Config B: awkward B=5, L=12 (batch + sequence padding paths) -------
    B2, L2 = 5, 12
    kq2, kv2 = jax.random.split(jax.random.PRNGKey(1), 2)
    query2 = jax.random.normal(kq2, (B2, 1, H), dtype=jnp.float32)
    vis2 = jax.random.normal(kv2, (B2, L2, F), dtype=jnp.float32)
    ctx2_ref, attn2_ref = _reference(query2, vis2, w1, w2, v)

    ctx2, attn2 = bahdanau_attention(query2, vis2, w1, w2, v, l_chunk=8)
    jax.block_until_ready((ctx2, attn2))
    assert ctx2.shape == (B2, F) and attn2.shape == (B2, L2, 1)
    assert jnp.allclose(ctx2, ctx2_ref, atol=2e-3, rtol=2e-3)
    assert jnp.allclose(attn2, attn2_ref, atol=2e-3, rtol=2e-3)

    print("KERNEL_OK")
</pallas_src>

<mosaic_0001>
module attributes {stable_mosaic.version = 11 : i64} {
  func.func @bahdanau_kernel(%arg0: i32, %arg1: i32, %arg2: memref<8x1x32xf32, #tpu.memory_space<vmem>>, %arg3: memref<8x16x16xf32, #tpu.memory_space<vmem>>, %arg4: memref<16x32xf32, #tpu.memory_space<vmem>>, %arg5: memref<1x32xf32, #tpu.memory_space<vmem>>, %arg6: memref<8x1x16xf32, #tpu.memory_space<vmem>>, %arg7: memref<8x1x16xf32, #tpu.memory_space<vmem>>, %arg8: memref<8x1xf32, #tpu.memory_space<vmem>>, %arg9: memref<8x1xf32, #tpu.memory_space<vmem>>, %arg10: memref<8x16xf32, #tpu.memory_space<vmem>>, %arg11: memref<1x8x16xf32, #tpu.memory_space<vmem>>) attributes {dimension_semantics = [#tpu.dimension_semantics<parallel>, #tpu.dimension_semantics<arbitrary>], iteration_bounds = array<i64: 2, 1>, scalar_prefetch = 0 : i64, scratch_operands = 4 : i64, tpu.core_type = #tpu.core_type<tc>, window_params = [{transform_indices = @transform_0, window_bounds = array<i64: 8, 1, 32>}, {transform_indices = @transform_1, window_bounds = array<i64: 8, 16, 16>}, {pipeline_mode = #tpu.pipeline_mode<synchronous>, transform_indices = @transform_2, window_bounds = array<i64: 16, 32>}, {pipeline_mode = #tpu.pipeline_mode<synchronous>, transform_indices = @transform_3, window_bounds = array<i64: 1, 32>}, {transform_indices = @transform_4, window_bounds = array<i64: 8, 1, 16>}, {transform_indices = @transform_5, window_bounds = array<i64: 8, 1, 16>}]} {
    %c0_i32 = arith.constant 0 : i32
    %0 = arith.cmpi eq, %arg1, %c0_i32 : i32
    %1 = arith.extui %0 : i1 to i32
    %c0_i32_0 = arith.constant 0 : i32
    %2 = arith.cmpi ne, %1, %c0_i32_0 : i32
    scf.if %2 {
      %cst_30 = arith.constant -1.000000e+30 : f32
      %49 = vector.broadcast %cst_30 : f32 to vector<8x1xf32>
      %c0_31 = arith.constant 0 : index
      %c0_32 = arith.constant 0 : index
      %50 = vector.load %arg8[%c0_31, %c0_32] : memref<8x1xf32, #tpu.memory_space<vmem>>, vector<8x1xf32>
      tpu.vector_store %arg8[%c0_31, %c0_32], %49 {strides = array<i32>} : memref<8x1xf32, #tpu.memory_space<vmem>>, vector<8x1xf32>,
      %cst_33 = arith.constant 0.000000e+00 : f32
      %51 = vector.broadcast %cst_33 : f32 to vector<8x1xf32>
      %c0_34 = arith.constant 0 : index
      %c0_35 = arith.constant 0 : index
      %52 = vector.load %arg9[%c0_34, %c0_35] : memref<8x1xf32, #tpu.memory_space<vmem>>, vector<8x1xf32>
      tpu.vector_store %arg9[%c0_34, %c0_35], %51 {strides = array<i32>} : memref<8x1xf32, #tpu.memory_space<vmem>>, vector<8x1xf32>,
      %cst_36 = arith.constant 0.000000e+00 : f32
      %53 = vector.broadcast %cst_36 : f32 to vector<8x16xf32>
      %c0_37 = arith.constant 0 : index
      %c0_38 = arith.constant 0 : index
      %54 = vector.load %arg10[%c0_37, %c0_38] : memref<8x16xf32, #tpu.memory_space<vmem>>, vector<8x16xf32>
      tpu.vector_store %arg10[%c0_37, %c0_38], %53 {strides = array<i32>} : memref<8x16xf32, #tpu.memory_space<vmem>>, vector<8x16xf32>,
    } else {
    }
    %c0 = arith.constant 0 : index
    %c0_1 = arith.constant 0 : index
    %c0_2 = arith.constant 0 : index
    %3 = vector.load %arg3[%c0, %c0_1, %c0_2] : memref<8x16x16xf32, #tpu.memory_space<vmem>>, vector<8x16x16xf32>
    %4 = vector.shape_cast %3 : vector<8x16x16xf32> to vector<128x16xf32>
    %c0_3 = arith.constant 0 : index
    %c0_4 = arith.constant 0 : index
    %5 = vector.load %arg4[%c0_3, %c0_4] : memref<16x32xf32, #tpu.memory_space<vmem>>, vector<16x32xf32>
    %cst = arith.constant dense<0.000000e+00> : vector<128x32xf32>
    %6 = tpu.matmul %4, %5, %cst {dimension_numbers = #tpu.dot_dimension_numbers<[1], [0], [0], [1], [0, 0, 1, 1], [], []>} : vector<128x16xf32>, vector<16x32xf32>, vector<128x32xf32> -> vector<128x32xf32>
    %7 = vector.shape_cast %6 : vector<128x32xf32> to vector<8x16x32xf32>
    %c0_5 = arith.constant 0 : index
    %c0_6 = arith.constant 0 : index
    %c0_7 = arith.constant 0 : index
    %8 = vector.load %arg2[%c0_5, %c0_6, %c0_7] : memref<8x1x32xf32, #tpu.memory_space<vmem>>, vector<8x1x32xf32>
    %9 = vector.broadcast %8 : vector<8x1x32xf32> to vector<8x16x32xf32>
    %10 = arith.addf %9, %7 : vector<8x16x32xf32>
    %11 = math.tanh %10 : vector<8x16x32xf32>
    %c0_8 = arith.constant 0 : index
    %c0_9 = arith.constant 0 : index
    %12 = vector.load %arg5[%c0_8, %c0_9] : memref<1x32xf32, #tpu.memory_space<vmem>>, vector<1x32xf32>
    %13 = vector.shape_cast %12 : vector<1x32xf32> to vector<1x1x32xf32>
    %14 = vector.broadcast %13 : vector<1x1x32xf32> to vector<8x16x32xf32>
    %15 = arith.mulf %11, %14 : vector<8x16x32xf32>
    %cst_10 = arith.constant dense<0.000000e+00> : vector<8x16xf32>
    %16 = vector.multi_reduction <add>, %15, %cst_10 [2] : vector<8x16x32xf32> to vector<8x16xf32>
    %17 = arith.index_cast %arg1 : i32 to index
    %c0_11 = arith.constant 0 : index
    %c0_12 = arith.constant 0 : index
    %18 = vector.load %arg11[%17, %c0_11, %c0_12] : memref<1x8x16xf32, #tpu.memory_space<vmem>>, vector<1x8x16xf32>
    %19 = vector.shape_cast %18 : vector<1x8x16xf32> to vector<8x16xf32>
    %20 = vector.shape_cast %16 : vector<8x16xf32> to vector<1x8x16xf32>
    tpu.vector_store %arg11[%17, %c0_11, %c0_12], %20 {strides = array<i32>} : memref<1x8x16xf32, #tpu.memory_space<vmem>>, vector<1x8x16xf32>,
    %c0_13 = arith.constant 0 : index
    %c0_14 = arith.constant 0 : index
    %21 = vector.load %arg8[%c0_13, %c0_14] : memref<8x1xf32, #tpu.memory_space<vmem>>, vector<8x1xf32>
    %cst_15 = arith.constant dense<0xFF800000> : vector<8xf32>
    %22 = vector.multi_reduction <maximumf>, %16, %cst_15 [1] : vector<8x16xf32> to vector<8xf32>
    %23 = vector.shape_cast %22 : vector<8xf32> to vector<8x1xf32>
    %24 = arith.maximumf %21, %23 : vector<8x1xf32>
    %25 = arith.subf %21, %24 : vector<8x1xf32>
    %26 = math.exp %25 : vector<8x1xf32>
    %27 = vector.broadcast %24 : vector<8x1xf32> to vector<8x16xf32>
    %28 = arith.subf %16, %27 : vector<8x16xf32>
    %29 = math.exp %28 : vector<8x16xf32>
    %c0_16 = arith.constant 0 : index
    %c0_17 = arith.constant 0 : index
    %30 = vector.load %arg9[%c0_16, %c0_17] : memref<8x1xf32, #tpu.memory_space<vmem>>, vector<8x1xf32>
    %31 = arith.mulf %26, %30 : vector<8x1xf32>
    %cst_18 = arith.constant dense<0.000000e+00> : vector<8xf32>
    %32 = vector.multi_reduction <add>, %29, %cst_18 [1] : vector<8x16xf32> to vector<8xf32>
    %33 = vector.shape_cast %32 : vector<8xf32> to vector<8x1xf32>
    %34 = arith.addf %31, %33 : vector<8x1xf32>
    %c0_19 = arith.constant 0 : index
    %c0_20 = arith.constant 0 : index
    %35 = vector.load %arg9[%c0_19, %c0_20] : memref<8x1xf32, #tpu.memory_space<vmem>>, vector<8x1xf32>
    tpu.vector_store %arg9[%c0_19, %c0_20], %34 {strides = array<i32>} : memref<8x1xf32, #tpu.memory_space<vmem>>, vector<8x1xf32>,
    %c0_21 = arith.constant 0 : index
    %c0_22 = arith.constant 0 : index
    %36 = vector.load %arg10[%c0_21, %c0_22] : memref<8x16xf32, #tpu.memory_space<vmem>>, vector<8x16xf32>
    %37 = vector.broadcast %26 : vector<8x1xf32> to vector<8x16xf32>
    %38 = arith.mulf %37, %36 : vector<8x16xf32>
    %39 = vector.shape_cast %29 : vector<8x16xf32> to vector<8x16x1xf32>
    %40 = vector.broadcast %39 : vector<8x16x1xf32> to vector<8x16x16xf32>
    %41 = arith.mulf %40, %3 : vector<8x16x16xf32>
    %cst_23 = arith.constant dense<0.000000e+00> : vector<8x16xf32>
    %42 = vector.multi_reduction <add>, %41, %cst_23 [1] : vector<8x16x16xf32> to vector<8x16xf32>
    %43 = arith.addf %38, %42 : vector<8x16xf32>
    %c0_24 = arith.constant 0 : index
    %c0_25 = arith.constant 0 : index
    %44 = vector.load %arg10[%c0_24, %c0_25] : memref<8x16xf32, #tpu.memory_space<vmem>>, vector<8x16xf32>
    tpu.vector_store %arg10[%c0_24, %c0_25], %43 {strides = array<i32>} : memref<8x16xf32, #tpu.memory_space<vmem>>, vector<8x16xf32>,
    %c0_26 = arith.constant 0 : index
    %c0_27 = arith.constant 0 : index
    %45 = vector.load %arg8[%c0_26, %c0_27] : memref<8x1xf32, #tpu.memory_space<vmem>>, vector<8x1xf32>
    tpu.vector_store %arg8[%c0_26, %c0_27], %24 {strides = array<i32>} : memref<8x1xf32, #tpu.memory_space<vmem>>, vector<8x1xf32>,
    %c0_i32_28 = arith.constant 0 : i32
    %46 = arith.cmpi eq, %arg1, %c0_i32_28 : i32
    %47 = arith.extui %46 : i1 to i32
    %c0_i32_29 = arith.constant 0 : i32
    %48 = arith.cmpi ne, %47, %c0_i32_29 : i32
    scf.if %48 {
      %c0_30 = arith.constant 0 : index
      %c0_31 = arith.constant 0 : index
      %49 = vector.load %arg9[%c0_30, %c0_31] : memref<8x1xf32, #tpu.memory_space<vmem>>, vector<8x1xf32>
      %50 = tpu.reciprocal %49 {approx = true} : vector<8x1xf32> -> vector<8x1xf32>
      %c0_32 = arith.constant 0 : index
      %c0_33 = arith.constant 0 : index
      %51 = vector.load %arg8[%c0_32, %c0_33] : memref<8x1xf32, #tpu.memory_space<vmem>>, vector<8x1xf32>
      %c0_34 = arith.constant 0 : index
      %c0_35 = arith.constant 0 : index
      %c0_36 = arith.constant 0 : index
      %52 = vector.load %arg11[%c0_34, %c0_35, %c0_36] : memref<1x8x16xf32, #tpu.memory_space<vmem>>, vector<1x8x16xf32>
      %53 = vector.shape_cast %52 : vector<1x8x16xf32> to vector<8x16xf32>
      %54 = vector.broadcast %51 : vector<8x1xf32> to vector<8x16xf32>
      %55 = arith.subf %53, %54 : vector<8x16xf32>
      %56 = math.exp %55 : vector<8x16xf32>
      %57 = vector.broadcast %50 : vector<8x1xf32> to vector<8x16xf32>
      %58 = arith.mulf %56, %57 : vector<8x16xf32>
      %59 = vector.shape_cast %58 : vector<8x16xf32> to vector<8x1x16xf32>
      %c0_37 = arith.constant 0 : index
      %c0_38 = arith.constant 0 : index
      %c0_39 = arith.constant 0 : index
      %60 = vector.load %arg7[%c0_37, %c0_38, %c0_39] : memref<8x1x16xf32, #tpu.memory_space<vmem>>, vector<8x1x16xf32>
      tpu.vector_store %arg7[%c0_37, %c0_38, %c0_39], %59 {strides = array<i32>} : memref<8x1x16xf32, #tpu.memory_space<vmem>>, vector<8x1x16xf32>,
      %c0_40 = arith.constant 0 : index
      %c0_41 = arith.constant 0 : index
      %61 = vector.load %arg10[%c0_40, %c0_41] : memref<8x16xf32, #tpu.memory_space<vmem>>, vector<8x16xf32>
      %62 = vector.broadcast %50 : vector<8x1xf32> to vector<8x16xf32>
      %63 = arith.mulf %61, %62 : vector<8x16xf32>
      %64 = vector.shape_cast %63 : vector<8x16xf32> to vector<8x1x16xf32>
      %c0_42 = arith.constant 0 : index
      %c0_43 = arith.constant 0 : index
      %c0_44 = arith.constant 0 : index
      %65 = vector.load %arg6[%c0_42, %c0_43, %c0_44] : memref<8x1x16xf32, #tpu.memory_space<vmem>>, vector<8x1x16xf32>
      tpu.vector_store %arg6[%c0_42, %c0_43, %c0_44], %64 {strides = array<i32>} : memref<8x1x16xf32, #tpu.memory_space<vmem>>, vector<8x1x16xf32>,
    } else {
    }
    return
  }
  func.func @transform_0(%arg0: i32, %arg1: i32) -> (i32, i32, i32) {
    %c0_i32 = arith.constant 0 : i32
    %c0_i32_0 = arith.constant 0 : i32
    %c0_i32_1 = arith.constant 0 : i32
    return %arg0, %c0_i32, %c0_i32_0 : i32, i32, i32
  }
  func.func @transform_1(%arg0: i32, %arg1: i32) -> (i32, i32, i32) {
    %c0_i32 = arith.constant 0 : i32
    %c0_i32_0 = arith.constant 0 : i32
    return %arg0, %arg1, %c0_i32 : i32, i32, i32
  }
  func.func @transform_2(%arg0: i32, %arg1: i32) -> (i32, i32) {
    %c0_i32 = arith.constant 0 : i32
    %c0_i32_0 = arith.constant 0 : i32
    %c0_i32_1 = arith.constant 0 : i32
    return %c0_i32, %c0_i32_0 : i32, i32
  }
  func.func @transform_3(%arg0: i32, %arg1: i32) -> (i32, i32) {
    %c0_i32 = arith.constant 0 : i32
    %c0_i32_0 = arith.constant 0 : i32
    %c0_i32_1 = arith.constant 0 : i32
    return %c0_i32, %c0_i32_0 : i32, i32
  }
  func.func @transform_4(%arg0: i32, %arg1: i32) -> (i32, i32, i32) {
    %c0_i32 = arith.constant 0 : i32
    %c0_i32_0 = arith.constant 0 : i32
    %c0_i32_1 = arith.constant 0 : i32
    return %arg0, %c0_i32, %c0_i32_0 : i32, i32, i32
  }
  func.func @transform_5(%arg0: i32, %arg1: i32) -> (i32, i32, i32) {
    %c0_i32 = arith.constant 0 : i32
    %c0_i32_0 = arith.constant 0 : i32
    %c0_i32_1 = arith.constant 0 : i32
    return %arg0, %c0_i32, %c0_i32_0 : i32, i32, i32
  }
}

</mosaic_0001>

<llo_original>
// kernel: tpu_custom_call.1
$region0: #{tpu_custom_call.1}
  #allocation0 [shape = 'u32[]', space=smem, size = 0x4, offset = 0x4, fixed_abs, tag = 'smem constant byte address 0x4 - core index']
  #allocation1 [shape = 'u32[144,128]{1,0:T(1,128)}', space=vmem, size = 0x12000, scoped, tag = 'internal scratch']
  #allocation2 [shape = 'f32[8,1]{1,0:T(8,128)}', space=vmem, size = 0x1000, scoped, tag = 'scratch operand']
  #allocation3 [shape = 'f32[8,1]{1,0:T(8,128)}', space=vmem, size = 0x1000, scoped, tag = 'scratch operand']
  #allocation4 [shape = 'f32[8,16]{1,0:T(8,128)}', space=vmem, size = 0x1000, scoped, tag = 'scratch operand']
  #allocation5 [shape = 'f32[1,8,16]{2,1,0:T(8,128)}', space=vmem, size = 0x1000, scoped, tag = 'scratch operand']
  %s0 = inlined_call_operand.hbm [shape: f32[16,1,32], index: 0, kind: input, shape index: {}]
  %s1 = inlined_call_operand.hbm [shape: f32[16,16,16], index: 1, kind: input, shape index: {}]
  %s2 = inlined_call_operand.hbm [shape: f32[16,32], index: 2, kind: input, shape index: {}]
  %s3 = inlined_call_operand.hbm [shape: f32[1,32], index: 3, kind: input, shape index: {}]
  %s4 = inlined_call_operand.hbm [shape: f32[16,1,16], index: 4, kind: output, shape index: {0}]
  %s5 = inlined_call_operand.hbm [shape: f32[16,1,16], index: 5, kind: output, shape index: {1}]
  %6 = xla_tuple %s4, %s5
  %s7 = sld [smem:[#allocation0]]
  $region81: #{tpu_custom_call.1} parent=0
    _
  %s9 = ssub.s32 1, %s7
  %s10 = scalar_select 0, %s9, %s7
  $region1: #{tpu_custom_call.1} parent=0
    #allocation6 [shape = 'u8[8192]{0}', space=vmem, size = 0x2000, scoped, tag = 'input window, operand 0']
    #allocation7 [shape = 's32[2]{0}', space=sflag, size = 0x8, scoped, tag = 'scoped memory for tpu_custom_call.1']
    #allocation8 [shape = 's32[2]{0}', space=sflag, size = 0x8, scoped, tag = 'scoped memory for tpu_custom_call.1']
    #allocation9 [shape = 'u8[131072]{0}', space=vmem, size = 0x20000, scoped, tag = 'input window, operand 1']
    #allocation10 [shape = 's32[2]{0}', space=sflag, size = 0x8, scoped, tag = 'scoped memory for tpu_custom_call.1']
    #allocation11 [shape = 'u8[8192]{0}', space=vmem, size = 0x2000, scoped, tag = 'input window, operand 2, single buffered']
    #allocation12 [shape = 'u8[512]{0}', space=vmem, size = 0x400, scoped, tag = 'input window, operand 3, single buffered']
    #allocation13 [shape = 's32[1]{0}', space=sflag, size = 0x4, scoped, tag = 'scoped memory for tpu_custom_call.1']
    #allocation14 [shape = 'u8[8192]{0}', space=vmem, size = 0x2000, scoped, tag = 'output window, operand 0']
    #allocation15 [shape = 'u8[8192]{0}', space=vmem, size = 0x2000, scoped, tag = 'output window, operand 1']
    #allocation16 [shape = 's32[2]{0}', space=sflag, size = 0x8, scoped, tag = 'scoped memory for tpu_custom_call.1']
    %11 = vsyncpa [#allocation7], 0
    %s12 = scalar_lea.sflag [#allocation7], 1
    %13 = vsyncpa %s12, 0
    %14 = vsyncpa [#allocation10], 0
    %s15 = scalar_lea.sflag [#allocation10], 1
    %16 = vsyncpa %s15, 0
    %17 = vsyncpa [#allocation13], 0
    %18 = vsyncpa [#allocation8], 0
    %s19 = scalar_lea.sflag [#allocation8], 1
    %20 = vsyncpa %s19, 0
    %21 = vsyncpa [#allocation16], 0
    %s22 = scalar_lea.sflag [#allocation16], 1
    %23 = vsyncpa %s22, 0
    loop: start=0, step=1, limit=4
    $region2: #{tpu_custom_call.1} parent=1 // loop_pre_header
      _
    $region3: #{tpu_custom_call.1} parent=1 // loop_header
      %s25 = sphi 0, %s29
      %p26 = scmp.ge.s32.totalorder %s25, 4
      %s32 = sphi 0, %s44
      %s33 = sphi 0, %s40
      %s34 = sphi 0, %s32
      %s35 = sphi 0, %s33
      %s36 = sphi 0, %s34
      %s37 = sphi 0, %s35
      %s47 = sphi 0, %s49
      %s50 = sphi 0, %s47
      %s51 = sphi 0, %s50
      %s67 = sphi 0, %s51
      %s75 = sphi 0, %s77
      %s78 = sphi 0, %s75
      %s79 = sphi 0, %s78
      %s95 = sphi 0, %s79
      %s99 = sphi 0, %s99
      %s101 = sphi 0, %s99
      %s102 = sphi 0, %s101
      %s116 = sphi 0, %s102
      %s120 = sphi 0, %s120
      %s122 = sphi 0, %s120
      %s123 = sphi 0, %s122
      %s137 = sphi 0, %s123
      %s143 = sphi 0, %s145
      %s146 = sphi 0, %s143
      %s147 = sphi 0, %s146
      %s163 = sphi 0, %s147
      %s169 = sphi 0, %s171
      %s172 = sphi 0, %s169
      %s173 = sphi 0, %s172
      %s189 = sphi 0, %s173
    $region4: #{tpu_custom_call.1} parent=1 // loop_header_branch
      %28 = sbr.rel (%p26) target = $region8
    $region5: #{tpu_custom_call.1} parent=1 // loop_body
      %s30 = ssub.s32 %s25, 1
      %s31 = ssub.s32 %s25, 2
      %s38 = sadd.s32 1, %s33
      %p39 = scmp.ge.s32.totalorder %s38, 1
      %s40 = scalar_select %p39, 0, %s38
      %s41 = sadd.s32 1, %s32
      %s42 = scalar_select %p39, %s41, %s32
      %p43 = scmp.ge.s32.totalorder %s42, 2
      %s44 = scalar_select %p43, 0, %s42
      %s45 = ssub.s32 %s32, %s44
      %p46 = scmp.eq.s32.totalorder %s45, 0
      %s48 = sadd.s32 %s47, 1
      %s49 = scalar_select %p46, %s47, %s48
      %p52 = pneg %p46
      %p53 = scmp.eq.s32.totalorder %s25, 1
      %p54 = por %p52, %p53
      %p55 = scmp.ne.s32.totalorder %s47, %s50
      %p56 = scmp.eq.s32.totalorder %s25, 0
      %p57 = por %p55, %p56
      %p58 = scmp.ne.s32.totalorder %s47, %s50
      %p59 = scmp.eq.s32.totalorder %s30, 1
      %p60 = por %p58, %p59
      %p61 = scmp.ne.s32.totalorder %s50, %s51
      %p62 = scmp.eq.s32.totalorder %s30, 0
      %p63 = por %p61, %p62
      %p64 = scmp.ne.s32.totalorder %s50, %s51
      %p65 = scmp.eq.s32.totalorder %s31, 1
      %p66 = por %p64, %p65
      %p68 = scmp.ne.s32.totalorder %s51, %s67
      %p69 = scmp.eq.s32.totalorder %s31, 0
      %p70 = por %p68, %p69
      %s71 = ssub.s32 %s32, %s44
      %s72 = ssub.s32 %s33, %s40
      %s73 = sor.u32 %s71, %s72
      %p74 = scmp.eq.s32.totalorder %s73, 0
      %s76 = sadd.s32 %s75, 1
      %s77 = scalar_select %p74, %s75, %s76
      %p80 = pneg %p74
      %p81 = scmp.eq.s32.totalorder %s25, 1
      %p82 = por %p80, %p81
      %p83 = scmp.ne.s32.totalorder %s75, %s78
      %p84 = scmp.eq.s32.totalorder %s25, 0
      %p85 = por %p83, %p84
      %p86 = scmp.ne.s32.totalorder %s75, %s78
      %p87 = scmp.eq.s32.totalorder %s30, 1
      %p88 = por %p86, %p87
      %p89 = scmp.ne.s32.totalorder %s78, %s79
      %p90 = scmp.eq.s32.totalorder %s30, 0
      %p91 = por %p89, %p90
      %p92 = scmp.ne.s32.totalorder %s78, %s79
      %p93 = scmp.eq.s32.totalorder %s31, 1
      %p94 = por %p92, %p93
      %p96 = scmp.ne.s32.totalorder %s79, %s95
      %p97 = scmp.eq.s32.totalorder %s31, 0
      %p98 = por %p96, %p97
      %s100 = sadd.s32 %s99, 1
      %p103 = scmp.eq.s32.totalorder %s25, 1
      %p104 = scmp.ne.s32.totalorder %s99, %s101
      %p105 = scmp.eq.s32.totalorder %s25, 0
      %p106 = por %p104, %p105
      %p107 = scmp.ne.s32.totalorder %s99, %s101
      %p108 = scmp.eq.s32.totalorder %s30, 1
      %p109 = por %p107, %p108
      %p110 = scmp.ne.s32.totalorder %s101, %s102
      %p111 = scmp.eq.s32.totalorder %s30, 0
      %p112 = por %p110, %p111
      %p113 = scmp.ne.s32.totalorder %s101, %s102
      %p114 = scmp.eq.s32.totalorder %s31, 1
      %p115 = por %p113, %p114
      %p117 = scmp.ne.s32.totalorder %s102, %s116
      %p118 = scmp.eq.s32.totalorder %s31, 0
      %p119 = por %p117, %p118
      %s121 = sadd.s32 %s120, 1
      %p124 = scmp.eq.s32.totalorder %s25, 1
      %p125 = scmp.ne.s32.totalorder %s120, %s122
      %p126 = scmp.eq.s32.totalorder %s25, 0
      %p127 = por %p125, %p126
      %p128 = scmp.ne.s32.totalorder %s120, %s122
      %p129 = scmp.eq.s32.totalorder %s30, 1
      %p130 = por %p128, %p129
      %p131 = scmp.ne.s32.totalorder %s122, %s123
      %p132 = scmp.eq.s32.totalorder %s30, 0
      %p133 = por %p131, %p132
      %p134 = scmp.ne.s32.totalorder %s122, %s123
      %p135 = scmp.eq.s32.totalorder %s31, 1
      %p136 = por %p134, %p135
      %p138 = scmp.ne.s32.totalorder %s123, %s137
      %p139 = scmp.eq.s32.totalorder %s31, 0
      %p140 = por %p138, %p139
      %s141 = ssub.s32 %s32, %s44
      %p142 = scmp.eq.s32.totalorder %s141, 0
      %s144 = sadd.s32 %s143, 1
      %s145 = scalar_select %p142, %s143, %s144
      %p148 = pneg %p142
      %p149 = scmp.eq.s32.totalorder %s25, 1
      %p150 = por %p148, %p149
      %p151 = scmp.ne.s32.totalorder %s143, %s146
      %p152 = scmp.eq.s32.totalorder %s25, 0
      %p153 = por %p151, %p152
      %p154 = scmp.ne.s32.totalorder %s143, %s146
      %p155 = scmp.eq.s32.totalorder %s30, 1
      %p156 = por %p154, %p155
      %p157 = scmp.ne.s32.totalorder %s146, %s147
      %p158 = scmp.eq.s32.totalorder %s30, 0
      %p159 = por %p157, %p158
      %p160 = scmp.ne.s32.totalorder %s146, %s147
      %p161 = scmp.eq.s32.totalorder %s31, 1
      %p162 = por %p160, %p161
      %p164 = scmp.ne.s32.totalorder %s147, %s163
      %p165 = scmp.eq.s32.totalorder %s31, 0
      %p166 = por %p164, %p165
      %s167 = ssub.s32 %s32, %s44
      %p168 = scmp.eq.s32.totalorder %s167, 0
      %s170 = sadd.s32 %s169, 1
      %s171 = scalar_select %p168, %s169, %s170
      %p174 = pneg %p168
      %p175 = scmp.eq.s32.totalorder %s25, 1
      %p176 = por %p174, %p175
      %p177 = scmp.ne.s32.totalorder %s169, %s172
      %p178 = scmp.eq.s32.totalorder %s25, 0
      %p179 = por %p177, %p178
      %p180 = scmp.ne.s32.totalorder %s169, %s172
      %p181 = scmp.eq.s32.totalorder %s30, 1
      %p182 = por %p180, %p181
      %p183 = scmp.ne.s32.totalorder %s172, %s173
      %p184 = scmp.eq.s32.totalorder %s30, 0
      %p185 = por %p183, %p184
      %p186 = scmp.ne.s32.totalorder %s172, %s173
      %p187 = scmp.eq.s32.totalorder %s31, 1
      %p188 = por %p186, %p187
      %p190 = scmp.ne.s32.totalorder %s173, %s189
      %p191 = scmp.eq.s32.totalorder %s31, 0
      %p192 = por %p190, %p191
      %p193 = scmp.le.s32.totalorder 1, %s25
      %p194 = scmp.lt.s32.totalorder %s25, 3
      %p195 = pnand %p193, %p194
      %p196 = pneg %p195
      // Predicated region
      $region9: #{tpu_custom_call.1} parent=5 // pred_check
        _
      $region10: #{tpu_custom_call.1} parent=5 // pred_check_branch
        %198 = sbr.rel (%p195) target = $region12
      $region11: #{tpu_custom_call.1} parent=5 // pred_region
        %s199 = ssub.s32 %s25, 1
        // Predicated region
        $region13: #{tpu_custom_call.1} parent=11 // pred_check
          %p200 = pneg %p112
        $region14: #{tpu_custom_call.1} parent=11 // pred_check_branch
          %202 = sbr.rel (%p200) target = $region16
        $region15: #{tpu_custom_call.1} parent=11 // pred_region
          %s204 = ssub.s32 256, 256
          %205 = vsyncadd [#allocation10], %s204
          %s206 = sshll.u32 [#allocation11], 4
          %s207 = int_to_ptr.vmem [resolvable:$true] %s206
          %212 = dma.hbm_to_vmem [thread:$0]  %s2, 256, %s207, [#allocation10], 128, 128, 8
        $region16: #{tpu_custom_call.1} parent=11 // pred_fallthru
          _
        // Predicated region
        $region17: #{tpu_custom_call.1} parent=11 // pred_check
          %p213 = pneg %p133
        $region18: #{tpu_custom_call.1} parent=11 // pred_check_branch
          %215 = sbr.rel (%p213) target = $region20
        $region19: #{tpu_custom_call.1} parent=11 // pred_region
          %s217 = ssub.s32 16, 16
          %218 = vsyncadd [#allocation13], %s217
          %s220 = sshll.u32 [#allocation12], 4
          %s221 = int_to_ptr.vmem [resolvable:$true] %s220
          %223 = dma.hbm_to_vmem [thread:$0]  %s3, 16, %s221, [#allocation13]
        $region20: #{tpu_custom_call.1} parent=11 // pred_fallthru
          _
      $region12: #{tpu_custom_call.1} parent=5 // pred_fallthru
        _
      %p224 = scmp.lt.s32.totalorder %s25, 2
      // Predicated region
      $region21: #{tpu_custom_call.1} parent=5 // pred_check
        %p225 = pneg %p224
      $region22: #{tpu_custom_call.1} parent=5 // pred_check_branch
        %227 = sbr.rel (%p225) target = $region24
      $region23: #{tpu_custom_call.1} parent=5 // pred_region
        // Predicated region
        $region25: #{tpu_custom_call.1} parent=23 // pred_check
          %p228 = pneg %p57
        $region26: #{tpu_custom_call.1} parent=23 // pred_check_branch
          %230 = sbr.rel (%p228) target = $region28
        $region27: #{tpu_custom_call.1} parent=23 // pred_region
          %s231 = sand.u32 %s47, 1
          %s232 = scalar_lea.sflag [#allocation7], %s231
          %s233 = sand.u32 %s47, 1
          %s234 = smul.addr %s233, 8
          %s235 = scalar_lea.vmem [#allocation6], %s234
          %s236 = smul.u32 8, %s32
          %s238 = ssub.s32 128, 128
          %239 = vsyncadd %s232, %s238
          %s240 = smul.addr %s236, 16
          %s241 = scalar_lea.hbm %s0, %s240
          %s242 = sshll.u32 %s235, 4
          %s243 = int_to_ptr.vmem [resolvable:$true] %s242
          %248 = dma.hbm_to_vmem [thread:$0]  %s241, 128, %s243, %s232, 16, 16, 1
        $region28: #{tpu_custom_call.1} parent=23 // pred_fallthru
          _
        // Predicated region
        $region29: #{tpu_custom_call.1} parent=23 // pred_check
          %p249 = pneg %p85
        $region30: #{tpu_custom_call.1} parent=23 // pred_check_branch
          %251 = sbr.rel (%p249) target = $region32
        $region31: #{tpu_custom_call.1} parent=23 // pred_region
          %s252 = sand.u32 %s25, 1
          %s253 = scalar_lea.sflag [#allocation10], %s252
          %s254 = sand.u32 %s75, 1
          %s255 = smul.addr %s254, 128
          %s256 = scalar_lea.vmem [#allocation9], %s255
          %s257 = smul.u32 8, %s32
          %s258 = smul.u32 2, %s33
          %s260 = ssub.s32 2048, 2048
          %261 = vsyncadd %s253, %s260
          %s262 = smul.addr %s257, 2
          %s263 = sadd.s32 %s258, %s262
          %s264 = smul.addr %s263, 128
          %s265 = scalar_lea.hbm %s1, %s264
          %s266 = sshll.u32 %s256, 4
          %s267 = int_to_ptr.vmem [resolvable:$true] %s266
          %272 = dma.hbm_to_vmem [thread:$0]  %s265, 2048, %s267, %s253, 128, 128, 8
        $region32: #{tpu_custom_call.1} parent=23 // pred_fallthru
          _
      $region24: #{tpu_custom_call.1} parent=5 // pred_fallthru
        _
      %p273 = scmp.le.s32.totalorder 1, %s25
      %p274 = scmp.lt.s32.totalorder %s25, 3
      %p275 = pnand %p273, %p274
      %p276 = pneg %p275
      // Predicated region
      $region33: #{tpu_custom_call.1} parent=5 // pred_check
        _
      $region34: #{tpu_custom_call.1} parent=5 // pred_check_branch
        %278 = sbr.rel (%p275) target = $region36
      $region35: #{tpu_custom_call.1} parent=5 // pred_region
        %s279 = ssub.s32 %s25, 1
        %s280 = sand.u32 %s50, 1
        %s281 = scalar_lea.sflag [#allocation7], %s280
        %s282 = sand.u32 %s50, 1
        %s283 = smul.addr %s282, 8
        %s284 = scalar_lea.vmem [#allocation6], %s283
        // Predicated region
        $region37: #{tpu_custom_call.1} parent=35 // pred_check
          %p285 = pneg %p63
        $region38: #{tpu_custom_call.1} parent=35 // pred_check_branch
          %287 = sbr.rel (%p285) target = $region40
        $region39: #{tpu_custom_call.1} parent=35 // pred_region
          %288 = dma.done %s281, 128
        $region40: #{tpu_custom_call.1} parent=35 // pred_fallthru
          _
        %s289 = sand.u32 %s30, 1
        %s290 = scalar_lea.sflag [#allocation10], %s289
        %s291 = sand.u32 %s78, 1
        %s292 = smul.addr %s291, 128
        %s293 = scalar_lea.vmem [#allocation9], %s292
        // Predicated region
        $region41: #{tpu_custom_call.1} parent=35 // pred_check
          %p294 = pneg %p91
        $region42: #{tpu_custom_call.1} parent=35 // pred_check_branch
          %296 = sbr.rel (%p294) target = $region44
        $region43: #{tpu_custom_call.1} parent=35 // pred_region
          %297 = dma.done %s290, 2048
        $region44: #{tpu_custom_call.1} parent=35 // pred_fallthru
          _
        // Predicated region
        $region45: #{tpu_custom_call.1} parent=35 // pred_check
          %p298 = pneg %p112
        $region46: #{tpu_custom_call.1} parent=35 // pred_check_branch
          %300 = sbr.rel (%p298) target = $region48
        $region47: #{tpu_custom_call.1} parent=35 // pred_region
          %301 = dma.done [#allocation10], 256
        $region48: #{tpu_custom_call.1} parent=35 // pred_fallthru
          _
        // Predicated region
        $region49: #{tpu_custom_call.1} parent=35 // pred_check
          %p302 = pneg %p133
        $region50: #{tpu_custom_call.1} parent=35 // pred_check_branch
          %304 = sbr.rel (%p302) target = $region52
        $region51: #{tpu_custom_call.1} parent=35 // pred_region
          %305 = dma.done [#allocation13], 16
        $region52: #{tpu_custom_call.1} parent=35 // pred_fallthru
          _
        %s306 = sand.u32 %s50, 1
        %s307 = scalar_lea.sflag [#allocation7], %s306
        %s308 = sand.u32 %s50, 1
        %s309 = smul.addr %s308, 8
        %s310 = scalar_lea.vmem [#allocation6], %s309
        %p311 = pneg %p63
        %p312 = pneg %p60
        %s313 = sand.u32 %s30, 1
        %s314 = scalar_lea.sflag [#allocation10], %s313
        %s315 = sand.u32 %s78, 1
        %s316 = smul.addr %s315, 128
        %s317 = scalar_lea.vmem [#allocation9], %s316
        %p318 = pneg %p91
        %p319 = pneg %p88
        %p320 = pneg %p112
        %p321 = pneg %p109
        %p322 = pneg %p133
        %p323 = pneg %p130
        %p324 = pneg %p159
        %p325 = pneg %p156
        %s326 = sand.u32 %s146, 1
        %s327 = scalar_lea.sflag [#allocation8], %s326
        %s328 = sand.u32 %s146, 1
        %s329 = smul.addr %s328, 8
        %s330 = scalar_lea.vmem [#allocation14], %s329
        %p331 = pneg %p185
        %p332 = pneg %p182
        %s333 = sand.u32 %s172, 1
        %s334 = scalar_lea.sflag [#allocation16], %s333
        %s335 = sand.u32 %s172, 1
        %s336 = smul.addr %s335, 8
        %s337 = scalar_lea.vmem [#allocation15], %s336
        %s338 = smul.u32 8, %s34
        %s339 = smul.u32 8, %s34
        %s340 = smul.u32 2, %s35
        %s341 = smul.u32 8, %s34
        %s342 = smul.u32 8, %s34
        %p343 = scmp.eq.s32.totalorder %s35, 0
        // Predicated region
        $region53: #{tpu_custom_call.1} parent=35 // pred_check
          %p344 = pneg %p343
        $region54: #{tpu_custom_call.1} parent=35 // pred_check_branch
          %346 = sbr.rel (%p344) target = $region56
        $region55: #{tpu_custom_call.1} parent=35 // pred_region
          %vm347 = vcmask 7168
          %348 = vst.msk [vmem:[#allocation2] sm:$0xff] %vm347, -1e+30
          %349 = vst.msk [vmem:[#allocation3] sm:$0xff] %vm347, 0.0
          %vm350 = vcmask 130048
          %351 = vst.msk [vmem:[#allocation4] sm:$0xff] %vm350, 0.0
        $region56: #{tpu_custom_call.1} parent=35 // pred_fallthru
          _
        %v352 = vld [vmem:[%s293] sm:$0xff]
        %v353 = vld [vmem:[%s293 + $0x8] sm:$0xff]
        %v354 = vld [vmem:[%s293 + $0x10] sm:$0xff]
        %v355 = vld [vmem:[%s293 + $0x18] sm:$0xff]
        %v356 = vld [vmem:[%s293 + $0x20] sm:$0xff]
        %v357 = vld [vmem:[%s293 + $0x28] sm:$0xff]
        %v358 = vld [vmem:[%s293 + $0x30] sm:$0xff]
        %v359 = vld [vmem:[%s293 + $0x38] sm:$0xff]
        %v360 = vld [vmem:[%s293 + $0x40] sm:$0xff]
        %v361 = vld [vmem:[%s293 + $0x48] sm:$0xff]
        %v362 = vld [vmem:[%s293 + $0x50] sm:$0xff]
        %v363 = vld [vmem:[%s293 + $0x58] sm:$0xff]
        %v364 = vld [vmem:[%s293 + $0x60] sm:$0xff]
        %v365 = vld [vmem:[%s293 + $0x68] sm:$0xff]
        %v366 = vld [vmem:[%s293 + $0x70] sm:$0xff]
        %v367 = vld [vmem:[%s293 + $0x78] sm:$0xff]
        %v368 = vld [vmem:[#allocation11] sm:$0xff]
        %v369 = vld [vmem:[#allocation11 + $0x8] sm:$0xff]
        %vm370 = vcmask 130048
        %v372 = vsel %vm370, %v352, 0
        %v375 = vsel %vm370, %v353, 0
        %v378 = vsel %vm370, %v354, 0
        %v381 = vsel %vm370, %v355, 0
        %v384 = vsel %vm370, %v356, 0
        %v387 = vsel %vm370, %v357, 0
        %v390 = vsel %vm370, %v358, 0
        %v393 = vsel %vm370, %v359, 0
        %v396 = vsel %vm370, %v360, 0
        %v399 = vsel %vm370, %v361, 0
        %v402 = vsel %vm370, %v362, 0
        %v405 = vsel %vm370, %v363, 0
        %v408 = vsel %vm370, %v364, 0
        %v411 = vsel %vm370, %v365, 0
        %v414 = vsel %vm370, %v366, 0
        %v417 = vsel %vm370, %v367, 0
        %419 = vmatprep.subr.mxu0 0.0
        %420 = vmatpush1.msra.mxu0 %v368
        %421 = vmatprep.subr.mxu0 0.0
        %422 = vmatpush1.msra.mxu0 %v369
        %423 = vmatprep.subr.mxu0 0.0
        %424 = vmatpush1.msra.mxu0 0.0
        %425 = vmatprep.subr.mxu0 0.0
        %426 = vmatpush1.msra.mxu0 0.0
        %427 = vmatprep.subr.mxu0 0.0
        %428 = vmatpush1.msra.mxu0 0.0
        %429 = vmatprep.subr.mxu0 0.0
        %430 = vmatpush1.msra.mxu0 0.0
        %431 = vmatprep.subr.mxu0 0.0
        %432 = vmatpush1.msra.mxu0 0.0
        %433 = vmatprep.subr.mxu0 0.0
        %434 = vmatpush1.msra.mxu0 0.0
        %435 = vmatprep.subr.mxu0 0.0
        %436 = vmatpush1.msra.mxu0 0.0
        %437 = vmatprep.subr.mxu0 0.0
        %438 = vmatpush1.msra.mxu0 0.0
        %439 = vmatprep.subr.mxu0 0.0
        %440 = vmatpush1.msra.mxu0 0.0
        %441 = vmatprep.subr.mxu0 0.0
        %442 = vmatpush1.msra.mxu0 0.0
        %443 = vmatprep.subr.mxu0 0.0
        %444 = vmatpush1.msra.mxu0 0.0
        %445 = vmatprep.subr.mxu0 0.0
        %446 = vmatpush1.msra.mxu0 0.0
        %447 = vmatprep.subr.mxu0 0.0
        %448 = vmatpush1.msra.mxu0 0.0
        %449 = vmatprep.subr.mxu0 0.0
        %450 = vmatpush1.msra.mxu0 0.0
        %451 = vmatprep.subr.mxu0 0.0
        %452 = vmatpush1.msra.mxu0 0.0
        %453 = vmatprep.subr.mxu0 0.0
        %454 = vmatpush1.msra.mxu0 0.0
        %455 = vmatprep.subr.mxu0 0.0
        %456 = vmatpush1.msra.mxu0 0.0
        %457 = vmatprep.subr.mxu0 0.0
        %458 = vmatpush1.msra.mxu0 0.0
        %459 = vmatprep.subr.mxu0 0.0
        %460 = vmatpush1.msra.mxu0 0.0
        %461 = vmatprep.subr.mxu0 0.0
        %462 = vmatpush1.msra.mxu0 0.0
        %463 = vmatprep.subr.mxu0 0.0
        %464 = vmatpush1.msra.mxu0 0.0
        %465 = vmatprep.subr.mxu0 0.0
        %466 = vmatpush1.msra.mxu0 0.0
        %467 = vmatprep.subr.mxu0 0.0
        %468 = vmatpush1.msra.mxu0 0.0
        %469 = vmatprep.subr.mxu0 0.0
        %470 = vmatpush1.msra.mxu0 0.0
        %471 = vmatprep.subr.mxu0 0.0
        %472 = vmatpush1.msra.mxu0 0.0
        %473 = vmatprep.subr.mxu0 0.0
        %474 = vmatpush1.msra.mxu0 0.0
        %475 = vmatprep.subr.mxu0 0.0
        %476 = vmatpush1.msra.mxu0 0.0
        %477 = vmatprep.subr.mxu0 0.0
        %478 = vmatpush1.msra.mxu0 0.0
        %479 = vmatprep.subr.mxu0 0.0
        %480 = vmatpush1.msra.mxu0 0.0
        %481 = vmatprep.subr.mxu0 0.0
        %482 = vmatpush1.msra.mxu0 0.0
        %483 = vmatprep.mubr.f32.mxu0 0.0
        %484 = vmatmul.mubr.f32.gmra.mrb[0].mxu0 %v372
        %v485 = vpop.f32.mrb[0].mxu0
        %v486 = vadd.f32 0.0, %v485
        %v487 = vpop.f32.mrb[0].mxu0
        %488 = vmatprep.mubr.f32.mxu0 0.0
        %489 = vmatmul.mubr.f32.gmra.mrb[0].mxu0 %v375
        %v490 = vpop.f32.mrb[0].mxu0
        %v491 = vadd.f32 0.0, %v490
        %v492 = vpop.f32.mrb[0].mxu0
        %493 = vmatprep.mubr.f32.mxu0 0.0
        %494 = vmatmul.mubr.f32.gmra.mrb[0].mxu0 %v378
        %v495 = vpop.f32.mrb[0].mxu0
        %v496 = vadd.f32 0.0, %v495
        %v497 = vpop.f32.mrb[0].mxu0
        %498 = vmatprep.mubr.f32.mxu0 0.0
        %499 = vmatmul.mubr.f32.gmra.mrb[0].mxu0 %v381
        %v500 = vpop.f32.mrb[0].mxu0
        %v501 = vadd.f32 0.0, %v500
        %v502 = vpop.f32.mrb[0].mxu0
        %503 = vmatprep.mubr.f32.mxu0 0.0
        %504 = vmatmul.mubr.f32.gmra.mrb[0].mxu0 %v384
        %v505 = vpop.f32.mrb[0].mxu0
        %v506 = vadd.f32 0.0, %v505
        %v507 = vpop.f32.mrb[0].mxu0
        %508 = vmatprep.mubr.f32.mxu0 0.0
        %509 = vmatmul.mubr.f32.gmra.mrb[0].mxu0 %v387
        %v510 = vpop.f32.mrb[0].mxu0
        %v511 = vadd.f32 0.0, %v510
        %v512 = vpop.f32.mrb[0].mxu0
        %513 = vmatprep.mubr.f32.mxu0 0.0
        %514 = vmatmul.mubr.f32.gmra.mrb[0].mxu0 %v390
        %v515 = vpop.f32.mrb[0].mxu0
        %v516 = vadd.f32 0.0, %v515
        %v517 = vpop.f32.mrb[0].mxu0
        %518 = vmatprep.mubr.f32.mxu0 0.0
        %519 = vmatmul.mubr.f32.gmra.mrb[0].mxu0 %v393
        %v520 = vpop.f32.mrb[0].mxu0
        %v521 = vadd.f32 0.0, %v520
        %v522 = vpop.f32.mrb[0].mxu0
        %523 = vmatprep.mubr.f32.mxu0 0.0
        %524 = vmatmul.mubr.f32.gmra.mrb[0].mxu0 %v396
        %v525 = vpop.f32.mrb[0].mxu0
        %v526 = vadd.f32 0.0, %v525
        %v527 = vpop.f32.mrb[0].mxu0
        %528 = vmatprep.mubr.f32.mxu0 0.0
        %529 = vmatmul.mubr.f32.gmra.mrb[0].mxu0 %v399
        %v530 = vpop.f32.mrb[0].mxu0
        %v531 = vadd.f32 0.0, %v530
        %v532 = vpop.f32.mrb[0].mxu0
        %533 = vmatprep.mubr.f32.mxu0 0.0
        %534 = vmatmul.mubr.f32.gmra.mrb[0].mxu0 %v402
        %v535 = vpop.f32.mrb[0].mxu0
        %v536 = vadd.f32 0.0, %v535
        %v537 = vpop.f32.mrb[0].mxu0
        %538 = vmatprep.mubr.f32.mxu0 0.0
        %539 = vmatmul.mubr.f32.gmra.mrb[0].mxu0 %v405
        %v540 = vpop.f32.mrb[0].mxu0
        %v541 = vadd.f32 0.0, %v540
        %v542 = vpop.f32.mrb[0].mxu0
        %543 = vmatprep.mubr.f32.mxu0 0.0
        %544 = vmatmul.mubr.f32.gmra.mrb[0].mxu0 %v408
        %v545 = vpop.f32.mrb[0].mxu0
        %v546 = vadd.f32 0.0, %v545
        %v547 = vpop.f32.mrb[0].mxu0
        %548 = vmatprep.mubr.f32.mxu0 0.0
        %549 = vmatmul.mubr.f32.gmra.mrb[0].mxu0 %v411
        %v550 = vpop.f32.mrb[0].mxu0
        %v551 = vadd.f32 0.0, %v550
        %v552 = vpop.f32.mrb[0].mxu0
        %553 = vmatprep.mubr.f32.mxu0 0.0
        %554 = vmatmul.mubr.f32.gmra.mrb[0].mxu0 %v414
        %v555 = vpop.f32.mrb[0].mxu0
        %v556 = vadd.f32 0.0, %v555
        %v557 = vpop.f32.mrb[0].mxu0
        %558 = vmatprep.mubr.f32.mxu0 0.0
        %559 = vmatmul.mubr.f32.gmra.mrb[0].mxu0 %v417
        %v560 = vpop.f32.mrb[0].mxu0
        %v561 = vadd.f32 0.0, %v560
        %v562 = vpop.f32.mrb[0].mxu0
        %563 = vdwg.mxu0
        %v564 = vld [vmem:[%s284] sm:$0x1]
        %v565 = vld [vmem:[%s284 + $0x1] sm:$0x1]
        %v566 = vld [vmem:[%s284 + $0x2] sm:$0x1]
        %v567 = vld [vmem:[%s284 + $0x3] sm:$0x1]
        %v568 = vld [vmem:[%s284 + $0x4] sm:$0x1]
        %v569 = vld [vmem:[%s284 + $0x5] sm:$0x1]
        %v570 = vld [vmem:[%s284 + $0x6] sm:$0x1]
        %v571 = vld [vmem:[%s284 + $0x7] sm:$0x1]
        %v580 = vlaneseq
        %v581 = vshrl.u32 %v580, 7
        %v582 = vsub.s32 0, %v581
        %v583 = vrot.slane %v564, %v582
        %v584 = vlaneseq
        %v585 = vshrl.u32 %v584, 7
        %v586 = vsub.s32 0, %v585
        %v587 = vrot.slane %v565, %v586
        %v588 = vlaneseq
        %v589 = vshrl.u32 %v588, 7
        %v590 = vsub.s32 0, %v589
        %v591 = vrot.slane %v566, %v590
        %v592 = vlaneseq
        %v593 = vshrl.u32 %v592, 7
        %v594 = vsub.s32 0, %v593
        %v595 = vrot.slane %v567, %v594
        %v596 = vlaneseq
        %v597 = vshrl.u32 %v596, 7
        %v598 = vsub.s32 0, %v597
        %v599 = vrot.slane %v568, %v598
        %v600 = vlaneseq
        %v601 = vshrl.u32 %v600, 7
        %v602 = vsub.s32 0, %v601
        %v603 = vrot.slane %v569, %v602
        %v604 = vlaneseq
        %v605 = vshrl.u32 %v604, 7
        %v606 = vsub.s32 0, %v605
        %v607 = vrot.slane %v570, %v606
        %v608 = vlaneseq
        %v609 = vshrl.u32 %v608, 7
        %v610 = vsub.s32 0, %v609
        %v611 = vrot.slane %v571, %v610
        %v620 = vadd.f32 %v583, %v486
        %v621 = vadd.f32 %v583, %v491
        %v622 = vadd.f32 %v587, %v496
        %v623 = vadd.f32 %v587, %v501
        %v624 = vadd.f32 %v591, %v506
        %v625 = vadd.f32 %v591, %v511
        %v626 = vadd.f32 %v595, %v516
        %v627 = vadd.f32 %v595, %v521
        %v628 = vadd.f32 %v599, %v526
        %v629 = vadd.f32 %v599, %v531
        %v630 = vadd.f32 %v603, %v536
        %v631 = vadd.f32 %v603, %v541
        %v632 = vadd.f32 %v607, %v546
        %v633 = vadd.f32 %v607, %v551
        %v634 = vadd.f32 %v611, %v556
        %v635 = vadd.f32 %v611, %v561
        %v636 = vtanh.pop %v620
        %v637 = vtanh.pop %v621
        %v638 = vtanh.pop %v622
        %v639 = vtanh.pop %v623
        %v640 = vtanh.pop %v624
        %v641 = vtanh.pop %v625
        %v642 = vtanh.pop %v626
        %v643 = vtanh.pop %v627
        %v644 = vtanh.pop %v628
        %v645 = vtanh.pop %v629
        %v646 = vtanh.pop %v630
        %v647 = vtanh.pop %v631
        %v648 = vtanh.pop %v632
        %v649 = vtanh.pop %v633
        %v650 = vtanh.pop %v634
        %v651 = vtanh.pop %v635
        %v652 = vld [vmem:[#allocation12] sm:$0x1]
        %v654 = vlaneseq
        %v655 = vshrl.u32 %v654, 7
        %v656 = vsub.s32 0, %v655
        %v657 = vrot.slane %v652, %v656
        %v659 = vmul.f32 %v636, %v657
        %v660 = vmul.f32 %v637, %v657
        %v661 = vmul.f32 %v638, %v657
        %v662 = vmul.f32 %v639, %v657
        %v663 = vmul.f32 %v640, %v657
        %v664 = vmul.f32 %v641, %v657
        %v665 = vmul.f32 %v642, %v657
        %v666 = vmul.f32 %v643, %v657
        %v667 = vmul.f32 %v644, %v657
        %v668 = vmul.f32 %v645, %v657
        %v669 = vmul.f32 %v646, %v657
        %v670 = vmul.f32 %v647, %v657
        %v671 = vmul.f32 %v648, %v657
        %v672 = vmul.f32 %v649, %v657
        %v673 = vmul.f32 %v650, %v657
        %v674 = vmul.f32 %v651, %v657
        %vm675 = vcmask 261120
        %v676 = vsel %vm675, %v659, 0.0
        %677 = vadd.xlane.f32.xlu0 %v676
        %v678 = vpop.xlane.xlu0 %677
        %v679 = vsel %vm675, %v660, 0.0
        %680 = vadd.xlane.f32.xlu0 %v679
        %v681 = vpop.xlane.xlu0 %680
        %v682 = vsel %vm675, %v661, 0.0
        %683 = vadd.xlane.f32.xlu0 %v682
        %v684 = vpop.xlane.xlu0 %683
        %v685 = vsel %vm675, %v662, 0.0
        %686 = vadd.xlane.f32.xlu0 %v685
        %v687 = vpop.xlane.xlu0 %686
        %v688 = vsel %vm675, %v663, 0.0
        %689 = vadd.xlane.f32.xlu0 %v688
        %v690 = vpop.xlane.xlu0 %689
        %v691 = vsel %vm675, %v664, 0.0
        %692 = vadd.xlane.f32.xlu0 %v691
        %v693 = vpop.xlane.xlu0 %692
        %v694 = vsel %vm675, %v665, 0.0
        %695 = vadd.xlane.f32.xlu0 %v694
        %v696 = vpop.xlane.xlu0 %695
        %v697 = vsel %vm675, %v666, 0.0
        %698 = vadd.xlane.f32.xlu0 %v697
        %v699 = vpop.xlane.xlu0 %698
        %v700 = vsel %vm675, %v667, 0.0
        %701 = vadd.xlane.f32.xlu0 %v700
        %v702 = vpop.xlane.xlu0 %701
        %v703 = vsel %vm675, %v668, 0.0
        %704 = vadd.xlane.f32.xlu0 %v703
        %v705 = vpop.xlane.xlu0 %704
        %v706 = vsel %vm675, %v669, 0.0
        %707 = vadd.xlane.f32.xlu0 %v706
        %v708 = vpop.xlane.xlu0 %707
        %v709 = vsel %vm675, %v670, 0.0
        %710 = vadd.xlane.f32.xlu0 %v709
        %v711 = vpop.xlane.xlu0 %710
        %v712 = vsel %vm675, %v671, 0.0
        %713 = vadd.xlane.f32.xlu0 %v712
        %v714 = vpop.xlane.xlu0 %713
        %v715 = vsel %vm675, %v672, 0.0
        %716 = vadd.xlane.f32.xlu0 %v715
        %v717 = vpop.xlane.xlu0 %716
        %v718 = vsel %vm675, %v673, 0.0
        %719 = vadd.xlane.f32.xlu0 %v718
        %v720 = vpop.xlane.xlu0 %719
        %v721 = vsel %vm675, %v674, 0.0
        %722 = vadd.xlane.f32.xlu0 %v721
        %v723 = vpop.xlane.xlu0 %722
        %v740 = vlaneseq
        %v741 = vand.u32 %v740, 127
        %v742 = vlaneseq
        %v743 = vshrl.u32 %v742, 7
        %v744 = vsub.s32 %v741, %v743
        %v745 = vrot.slane %v678, %v744
        %v746 = vadd.s32 %v741, 4294967288
        %v747 = vlaneseq
        %v748 = vshrl.u32 %v747, 7
        %v749 = vsub.s32 %v746, %v748
        %v750 = vrot.slane %v681, %v749
        %vm751 = vcmask 130112
        %v752 = vsel %vm751, %v750, %v745
        %v753 = vlaneseq
        %v754 = vshrl.u32 %v753, 7
        %v755 = vsub.s32 %v741, %v754
        %v756 = vrot.slane %v684, %v755
        %v757 = vlaneseq
        %v758 = vshrl.u32 %v757, 7
        %v759 = vsub.s32 %v746, %v758
        %v760 = vrot.slane %v687, %v759
        %v761 = vsel %vm751, %v760, %v756
        %v762 = vlaneseq
        %v763 = vshrl.u32 %v762, 7
        %v764 = vsub.s32 %v741, %v763
        %v765 = vrot.slane %v690, %v764
        %v766 = vlaneseq
        %v767 = vshrl.u32 %v766, 7
        %v768 = vsub.s32 %v746, %v767
        %v769 = vrot.slane %v693, %v768
        %v770 = vsel %vm751, %v769, %v765
        %v771 = vlaneseq
        %v772 = vshrl.u32 %v771, 7
        %v773 = vsub.s32 %v741, %v772
        %v774 = vrot.slane %v696, %v773
        %v775 = vlaneseq
        %v776 = vshrl.u32 %v775, 7
        %v777 = vsub.s32 %v746, %v776
        %v778 = vrot.slane %v699, %v777
        %v779 = vsel %vm751, %v778, %v774
        %v780 = vlaneseq
        %v781 = vshrl.u32 %v780, 7
        %v782 = vsub.s32 %v741, %v781
        %v783 = vrot.slane %v702, %v782
        %v784 = vlaneseq
        %v785 = vshrl.u32 %v784, 7
        %v786 = vsub.s32 %v746, %v785
        %v787 = vrot.slane %v705, %v786
        %v788 = vsel %vm751, %v787, %v783
        %v789 = vlaneseq
        %v790 = vshrl.u32 %v789, 7
        %v791 = vsub.s32 %v741, %v790
        %v792 = vrot.slane %v708, %v791
        %v793 = vlaneseq
        %v794 = vshrl.u32 %v793, 7
        %v795 = vsub.s32 %v746, %v794
        %v796 = vrot.slane %v711, %v795
        %v797 = vsel %vm751, %v796, %v792
        %v798 = vlaneseq
        %v799 = vshrl.u32 %v798, 7
        %v800 = vsub.s32 %v741, %v799
        %v801 = vrot.slane %v714, %v800
        %v802 = vlaneseq
        %v803 = vshrl.u32 %v802, 7
        %v804 = vsub.s32 %v746, %v803
        %v805 = vrot.slane %v717, %v804
        %v806 = vsel %vm751, %v805, %v801
        %v807 = vlaneseq
        %v808 = vshrl.u32 %v807, 7
        %v809 = vsub.s32 %v741, %v808
        %v810 = vrot.slane %v720, %v809
        %v811 = vlaneseq
        %v812 = vshrl.u32 %v811, 7
        %v813 = vsub.s32 %v746, %v812
        %v814 = vrot.slane %v723, %v813
        %v815 = vsel %vm751, %v814, %v810
        %vm816 = vcmask 1041409
        %v817 = vsel %vm816, %v761, %v752
        %vm818 = vcmask 1042434
        %v819 = vsel %vm818, %v770, %v817
        %vm820 = vcmask 1043459
        %v821 = vsel %vm820, %v779, %v819
        %vm822 = vcmask 1044484
        %v823 = vsel %vm822, %v788, %v821
        %vm824 = vcmask 1045509
        %v825 = vsel %vm824, %v797, %v823
        %vm826 = vcmask 1046534
        %v827 = vsel %vm826, %v806, %v825
        %vm828 = vcmask 1047559
        %v829 = vsel %vm828, %v815, %v827
        %s831 = smul.u32 %s35, 8
        %s832 = scalar_lea.vmem [#allocation5], %s831
        %833 = vst.msk [vmem:[%s832] sm:$0xff] %vm370, %v829
        %v834 = vld [vmem:[#allocation2] sm:$0xff]
        %v835 = vsel %vm370, %v829, -inf
        %836 = vmax.xlane.f32.xlu0 %v835
        %v837 = vpop.xlane.xlu0 %836
        %v838 = vmax.f32 %v834, %v837
        %v839 = vsub.f32 %v834, %v838
        %v840 = vmul.f32 %v839, 1.442695
        %v841 = vpow.pop %v840
        %843 = vset.pattern.permute.xlu0 0
        %844 = vperm.xlu0 %843, %v838
        %v845 = vpop.permute.xlu0 %844
        %v846 = vlaneseq
        %v847 = vshrl.u32 %v846, 7
        %v848 = vsub.s32 0, %v847
        %v849 = vrot.slane %v845, %v848
        %v850 = vlaneseq
        %v851 = vshrl.u32 %v850, 7
        %v852 = vsub.s32 1, %v851
        %v853 = vrot.slane %v845, %v852
        %v854 = vlaneseq
        %v855 = vshrl.u32 %v854, 7
        %v856 = vsub.s32 2, %v855
        %v857 = vrot.slane %v845, %v856
        %v858 = vlaneseq
        %v859 = vshrl.u32 %v858, 7
        %v860 = vsub.s32 3, %v859
        %v861 = vrot.slane %v845, %v860
        %v862 = vlaneseq
        %v863 = vshrl.u32 %v862, 7
        %v864 = vsub.s32 4, %v863
        %v865 = vrot.slane %v845, %v864
        %v866 = vlaneseq
        %v867 = vshrl.u32 %v866, 7
        %v868 = vsub.s32 5, %v867
        %v869 = vrot.slane %v845, %v868
        %v870 = vlaneseq
        %v871 = vshrl.u32 %v870, 7
        %v872 = vsub.s32 6, %v871
        %v873 = vrot.slane %v845, %v872
        %v874 = vlaneseq
        %v875 = vshrl.u32 %v874, 7
        %v876 = vsub.s32 7, %v875
        %v877 = vrot.slane %v845, %v876
        %v886 = vsub.f32 %v678, %v849
        %v887 = vsub.f32 %v681, %v849
        %v888 = vsub.f32 %v684, %v853
        %v889 = vsub.f32 %v687, %v853
        %v890 = vsub.f32 %v690, %v857
        %v891 = vsub.f32 %v693, %v857
        %v892 = vsub.f32 %v696, %v861
        %v893 = vsub.f32 %v699, %v861
        %v894 = vsub.f32 %v702, %v865
        %v895 = vsub.f32 %v705, %v865
        %v896 = vsub.f32 %v708, %v869
        %v897 = vsub.f32 %v711, %v869
        %v898 = vsub.f32 %v714, %v873
        %v899 = vsub.f32 %v717, %v873
        %v900 = vsub.f32 %v720, %v877
        %v901 = vsub.f32 %v723, %v877
        %v902 = vmul.f32 %v886, 1.442695
        %v903 = vpow.pop %v902
        %v904 = vmul.f32 %v887, 1.442695
        %v905 = vpow.pop %v904
        %v906 = vmul.f32 %v888, 1.442695
        %v907 = vpow.pop %v906
        %v908 = vmul.f32 %v889, 1.442695
        %v909 = vpow.pop %v908
        %v910 = vmul.f32 %v890, 1.442695
        %v911 = vpow.pop %v910
        %v912 = vmul.f32 %v891, 1.442695
        %v913 = vpow.pop %v912
        %v914 = vmul.f32 %v892, 1.442695
        %v915 = vpow.pop %v914
        %v916 = vmul.f32 %v893, 1.442695
        %v917 = vpow.pop %v916
        %v918 = vmul.f32 %v894, 1.442695
        %v919 = vpow.pop %v918
        %v920 = vmul.f32 %v895, 1.442695
        %v921 = vpow.pop %v920
        %v922 = vmul.f32 %v896, 1.442695
        %v923 = vpow.pop %v922
        %v924 = vmul.f32 %v897, 1.442695
        %v925 = vpow.pop %v924
        %v926 = vmul.f32 %v898, 1.442695
        %v927 = vpow.pop %v926
        %v928 = vmul.f32 %v899, 1.442695
        %v929 = vpow.pop %v928
        %v930 = vmul.f32 %v900, 1.442695
        %v931 = vpow.pop %v930
        %v932 = vmul.f32 %v901, 1.442695
        %v933 = vpow.pop %v932
        %v934 = vld [vmem:[#allocation3] sm:$0xff]
        %v935 = vmul.f32 %v841, %v934
        %952 = vset.pattern.permute.xlu0 0
        %953 = vperm.xlu0 %952, %v903
        %v954 = vpop.permute.xlu0 %953
        %955 = vset.pattern.permute.xlu0 0
        %956 = vperm.xlu0 %955, %v905
        %v957 = vpop.permute.xlu0 %956
        %958 = vset.pattern.permute.xlu0 0
        %959 = vperm.xlu0 %958, %v907
        %v960 = vpop.permute.xlu0 %959
        %961 = vset.pattern.permute.xlu0 0
        %962 = vperm.xlu0 %961, %v909
        %v963 = vpop.permute.xlu0 %962
        %964 = vset.pattern.permute.xlu0 0
        %965 = vperm.xlu0 %964, %v911
        %v966 = vpop.permute.xlu0 %965
        %967 = vset.pattern.permute.xlu0 0
        %968 = vperm.xlu0 %967, %v913
        %v969 = vpop.permute.xlu0 %968
        %970 = vset.pattern.permute.xlu0 0
        %971 = vperm.xlu0 %970, %v915
        %v972 = vpop.permute.xlu0 %971
        %973 = vset.pattern.permute.xlu0 0
        %974 = vperm.xlu0 %973, %v917
        %v975 = vpop.permute.xlu0 %974
        %976 = vset.pattern.permute.xlu0 0
        %977 = vperm.xlu0 %976, %v919
        %v978 = vpop.permute.xlu0 %977
        %979 = vset.pattern.permute.xlu0 0
        %980 = vperm.xlu0 %979, %v921
        %v981 = vpop.permute.xlu0 %980
        %982 = vset.pattern.permute.xlu0 0
        %983 = vperm.xlu0 %982, %v923
        %v984 = vpop.permute.xlu0 %983
        %985 = vset.pattern.permute.xlu0 0
        %986 = vperm.xlu0 %985, %v925
        %v987 = vpop.permute.xlu0 %986
        %988 = vset.pattern.permute.xlu0 0
        %989 = vperm.xlu0 %988, %v927
        %v990 = vpop.permute.xlu0 %989
        %991 = vset.pattern.permute.xlu0 0
        %992 = vperm.xlu0 %991, %v929
        %v993 = vpop.permute.xlu0 %992
        %994 = vset.pattern.permute.xlu0 0
        %995 = vperm.xlu0 %994, %v931
        %v996 = vpop.permute.xlu0 %995
        %997 = vset.pattern.permute.xlu0 0
        %998 = vperm.xlu0 %997, %v933
        %v999 = vpop.permute.xlu0 %998
        %v1000 = vlaneseq
        %v1001 = vshrl.u32 %v1000, 7
        %v1002 = vsub.s32 %v741, %v1001
        %v1003 = vrot.slane %v954, %v1002
        %v1004 = vlaneseq
        %v1005 = vshrl.u32 %v1004, 7
        %v1006 = vsub.s32 %v746, %v1005
        %v1007 = vrot.slane %v957, %v1006
        %v1008 = vsel %vm751, %v1007, %v1003
        %v1009 = vlaneseq
        %v1010 = vshrl.u32 %v1009, 7
        %v1011 = vsub.s32 %v741, %v1010
        %v1012 = vrot.slane %v960, %v1011
        %v1013 = vlaneseq
        %v1014 = vshrl.u32 %v1013, 7
        %v1015 = vsub.s32 %v746, %v1014
        %v1016 = vrot.slane %v963, %v1015
        %v1017 = vsel %vm751, %v1016, %v1012
        %v1018 = vlaneseq
        %v1019 = vshrl.u32 %v1018, 7
        %v1020 = vsub.s32 %v741, %v1019
        %v1021 = vrot.slane %v966, %v1020
        %v1022 = vlaneseq
        %v1023 = vshrl.u32 %v1022, 7
        %v1024 = vsub.s32 %v746, %v1023
        %v1025 = vrot.slane %v969, %v1024
        %v1026 = vsel %vm751, %v1025, %v1021
        %v1027 = vlaneseq
        %v1028 = vshrl.u32 %v1027, 7
        %v1029 = vsub.s32 %v741, %v1028
        %v1030 = vrot.slane %v972, %v1029
        %v1031 = vlaneseq
        %v1032 = vshrl.u32 %v1031, 7
        %v1033 = vsub.s32 %v746, %v1032
        %v1034 = vrot.slane %v975, %v1033
        %v1035 = vsel %vm751, %v1034, %v1030
        %v1036 = vlaneseq
        %v1037 = vshrl.u32 %v1036, 7
        %v1038 = vsub.s32 %v741, %v1037
        %v1039 = vrot.slane %v978, %v1038
        %v1040 = vlaneseq
        %v1041 = vshrl.u32 %v1040, 7
        %v1042 = vsub.s32 %v746, %v1041
        %v1043 = vrot.slane %v981, %v1042
        %v1044 = vsel %vm751, %v1043, %v1039
        %v1045 = vlaneseq
        %v1046 = vshrl.u32 %v1045, 7
        %v1047 = vsub.s32 %v741, %v1046
        %v1048 = vrot.slane %v984, %v1047
        %v1049 = vlaneseq
        %v1050 = vshrl.u32 %v1049, 7
        %v1051 = vsub.s32 %v746, %v1050
        %v1052 = vrot.slane %v987, %v1051
        %v1053 = vsel %vm751, %v1052, %v1048
        %v1054 = vlaneseq
        %v1055 = vshrl.u32 %v1054, 7
        %v1056 = vsub.s32 %v741, %v1055
        %v1057 = vrot.slane %v990, %v1056
        %v1058 = vlaneseq
        %v1059 = vshrl.u32 %v1058, 7
        %v1060 = vsub.s32 %v746, %v1059
        %v1061 = vrot.slane %v993, %v1060
        %v1062 = vsel %vm751, %v1061, %v1057
        %v1063 = vlaneseq
        %v1064 = vshrl.u32 %v1063, 7
        %v1065 = vsub.s32 %v741, %v1064
        %v1066 = vrot.slane %v996, %v1065
        %v1067 = vlaneseq
        %v1068 = vshrl.u32 %v1067, 7
        %v1069 = vsub.s32 %v746, %v1068
        %v1070 = vrot.slane %v999, %v1069
        %v1071 = vsel %vm751, %v1070, %v1066
        %v1072 = vsel %vm816, %v1017, %v1008
        %v1073 = vsel %vm818, %v1026, %v1072
        %v1074 = vsel %vm820, %v1035, %v1073
        %v1075 = vsel %vm822, %v1044, %v1074
        %v1076 = vsel %vm824, %v1053, %v1075
        %v1077 = vsel %vm826, %v1062, %v1076
        %v1078 = vsel %vm828, %v1071, %v1077
        %v1080 = vsel %vm370, %v1078, 0.0
        %1081 = vadd.xlane.f32.xlu0 %v1080
        %v1082 = vpop.xlane.xlu0 %1081
        %v1083 = vadd.f32 %v935, %v1082
        %vm1084 = vcmask 7168
        %1085 = vst.msk [vmem:[#allocation3] sm:$0xff] %vm1084, %v1083
        %v1086 = vld [vmem:[#allocation4] sm:$0xff]
        %1088 = vset.pattern.permute.xlu0 0
        %1089 = vperm.xlu0 %1088, %v841
        %v1090 = vpop.permute.xlu0 %1089
        %v1092 = vmul.f32 %v1090, %v1086
        %v1109 = vmul.f32 %v954, %v352
        %v1110 = vmul.f32 %v957, %v353
        %v1111 = vmul.f32 %v960, %v354
        %v1112 = vmul.f32 %v963, %v355
        %v1113 = vmul.f32 %v966, %v356
        %v1114 = vmul.f32 %v969, %v357
        %v1115 = vmul.f32 %v972, %v358
        %v1116 = vmul.f32 %v975, %v359
        %v1117 = vmul.f32 %v978, %v360
        %v1118 = vmul.f32 %v981, %v361
        %v1119 = vmul.f32 %v984, %v362
        %v1120 = vmul.f32 %v987, %v363
        %v1121 = vmul.f32 %v990, %v364
        %v1122 = vmul.f32 %v993, %v365
        %v1123 = vmul.f32 %v996, %v366
        %v1124 = vmul.f32 %v999, %v367
        %v1125 = vsel %vm370, %v1109, 0.0
        %v1126 = vsel %vm370, %v1110, 0.0
        %v1127 = vadd.f32 %v1125, %v1126
        %v1128 = vrot.slane %v1127, 4
        %v1129 = vadd.f32 %v1127, %v1128
        %v1130 = vrot.slane %v1129, 2
        %v1131 = vadd.f32 %v1129, %v1130
        %v1132 = vrot.slane %v1131, 1
        %v1133 = vadd.f32 %v1131, %v1132
        %v1134 = vsel %vm370, %v1111, 0.0
        %v1135 = vsel %vm370, %v1112, 0.0
        %v1136 = vadd.f32 %v1134, %v1135
        %v1137 = vrot.slane %v1136, 4
        %v1138 = vadd.f32 %v1136, %v1137
        %v1139 = vrot.slane %v1138, 2
        %v1140 = vadd.f32 %v1138, %v1139
        %v1141 = vrot.slane %v1140, 1
        %v1142 = vadd.f32 %v1140, %v1141
        %v1143 = vsel %vm370, %v1113, 0.0
        %v1144 = vsel %vm370, %v1114, 0.0
        %v1145 = vadd.f32 %v1143, %v1144
        %v1146 = vrot.slane %v1145, 4
        %v1147 = vadd.f32 %v1145, %v1146
        %v1148 = vrot.slane %v1147, 2
        %v1149 = vadd.f32 %v1147, %v1148
        %v1150 = vrot.slane %v1149, 1
        %v1151 = vadd.f32 %v1149, %v1150
        %v1152 = vsel %vm370, %v1115, 0.0
        %v1153 = vsel %vm370, %v1116, 0.0
        %v1154 = vadd.f32 %v1152, %v1153
        %v1155 = vrot.slane %v1154, 4
        %v1156 = vadd.f32 %v1154, %v1155
        %v1157 = vrot.slane %v1156, 2
        %v1158 = vadd.f32 %v1156, %v1157
        %v1159 = vrot.slane %v1158, 1
        %v1160 = vadd.f32 %v1158, %v1159
        %v1161 = vsel %vm370, %v1117, 0.0
        %v1162 = vsel %vm370, %v1118, 0.0
        %v1163 = vadd.f32 %v1161, %v1162
        %v1164 = vrot.slane %v1163, 4
        %v1165 = vadd.f32 %v1163, %v1164
        %v1166 = vrot.slane %v1165, 2
        %v1167 = vadd.f32 %v1165, %v1166
        %v1168 = vrot.slane %v1167, 1
        %v1169 = vadd.f32 %v1167, %v1168
        %v1170 = vsel %vm370, %v1119, 0.0
        %v1171 = vsel %vm370, %v1120, 0.0
        %v1172 = vadd.f32 %v1170, %v1171
        %v1173 = vrot.slane %v1172, 4
        %v1174 = vadd.f32 %v1172, %v1173
        %v1175 = vrot.slane %v1174, 2
        %v1176 = vadd.f32 %v1174, %v1175
        %v1177 = vrot.slane %v1176, 1
        %v1178 = vadd.f32 %v1176, %v1177
        %v1179 = vsel %vm370, %v1121, 0.0
        %v1180 = vsel %vm370, %v1122, 0.0
        %v1181 = vadd.f32 %v1179, %v1180
        %v1182 = vrot.slane %v1181, 4
        %v1183 = vadd.f32 %v1181, %v1182
        %v1184 = vrot.slane %v1183, 2
        %v1185 = vadd.f32 %v1183, %v1184
        %v1186 = vrot.slane %v1185, 1
        %v1187 = vadd.f32 %v1185, %v1186
        %v1188 = vsel %vm370, %v1123, 0.0
        %v1189 = vsel %vm370, %v1124, 0.0
        %v1190 = vadd.f32 %v1188, %v1189
        %v1191 = vrot.slane %v1190, 4
        %v1192 = vadd.f32 %v1190, %v1191
        %v1193 = vrot.slane %v1192, 2
        %v1194 = vadd.f32 %v1192, %v1193
        %v1195 = vrot.slane %v1194, 1
        %v1196 = vadd.f32 %v1194, %v1195
        %v1205 = vsel %vm816, %v1142, %v1133
        %v1206 = vsel %vm818, %v1151, %v1205
        %v1207 = vsel %vm820, %v1160, %v1206
        %v1208 = vsel %vm822, %v1169, %v1207
        %v1209 = vsel %vm824, %v1178, %v1208
        %v1210 = vsel %vm826, %v1187, %v1209
        %v1211 = vsel %vm828, %v1196, %v1210
        %v1213 = vadd.f32 %v1092, %v1211
        %1214 = vst.msk [vmem:[#allocation4] sm:$0xff] %vm370, %v1213
        %1215 = vst.msk [vmem:[#allocation2] sm:$0xff] %vm1084, %v838
        // Predicated region
        $region57: #{tpu_custom_call.1} parent=35 // pred_check
          %p1216 = pneg %p343
        $region58: #{tpu_custom_call.1} parent=35 // pred_check_branch
          %1218 = sbr.rel (%p1216) target = $region60
        $region59: #{tpu_custom_call.1} parent=35 // pred_region
          %v1219 = vld [vmem:[#allocation3] sm:$0xff]
          %v1220 = vrcp.pop %v1219
          %v1221 = vld [vmem:[#allocation2] sm:$0xff]
          %v1222 = vld [vmem:[#allocation5] sm:$0xff]
          %1224 = vset.pattern.permute.xlu0 0
          %1225 = vperm.xlu0 %1224, %v1221
          %v1226 = vpop.permute.xlu0 %1225
          %v1228 = vsub.f32 %v1222, %v1226
          %v1229 = vmul.f32 %v1228, 1.442695
          %v1230 = vpow.pop %v1229
          %1232 = vset.pattern.permute.xlu0 0
          %1233 = vperm.xlu0 %1232, %v1220
          %v1234 = vpop.permute.xlu0 %1233
          %v1236 = vmul.f32 %v1230, %v1234
          %v1238 = vcombine.high %v1236, %v1236
          %v1240 = vunpack.c.l.s4 1966171168
          %v1241 = vunpack.c.0.s8 %v1240
          %v1242 = vlaneseq
          %v1243 = vshrl.u32 %v1242, 7
          %v1244 = vsub.s32 %v1241, %v1243
          %v1245 = vrot.slane %v1236, %v1244
          %v1247 = vunpack.c.l.s4 1966171168
          %v1248 = vunpack.c.0.s8 %v1247
          %v1249 = vlaneseq
          %v1250 = vshrl.u32 %v1249, 7
          %v1251 = vsub.s32 %v1248, %v1250
          %v1252 = vrot.slane %v1238, %v1251
          %v1253 = vcombine.high %v1245, %v1245
          %v1254 = vcombine.high %v1252, %v1252
          %v1256 = vunpack.c.l.s4 1966171168
          %v1257 = vunpack.c.0.s8 %v1256
          %v1258 = vlaneseq
          %v1259 = vshrl.u32 %v1258, 7
          %v1260 = vsub.s32 %v1257, %v1259
          %v1261 = vrot.slane %v1245, %v1260
          %v1263 = vunpack.c.l.s4 1966171168
          %v1264 = vunpack.c.0.s8 %v1263
          %v1265 = vlaneseq
          %v1266 = vshrl.u32 %v1265, 7
          %v1267 = vsub.s32 %v1264, %v1266
          %v1268 = vrot.slane %v1252, %v1267
          %v1270 = vunpack.c.l.s4 1966171168
          %v1271 = vunpack.c.0.s8 %v1270
          %v1272 = vlaneseq
          %v1273 = vshrl.u32 %v1272, 7
          %v1274 = vsub.s32 %v1271, %v1273
          %v1275 = vrot.slane %v1253, %v1274
          %v1277 = vunpack.c.l.s4 1966171168
          %v1278 = vunpack.c.0.s8 %v1277
          %v1279 = vlaneseq
          %v1280 = vshrl.u32 %v1279, 7
          %v1281 = vsub.s32 %v1278, %v1280
          %v1282 = vrot.slane %v1254, %v1281
          %v1283 = vcombine.high %v1261, %v1261
          %v1284 = vcombine.high %v1268, %v1268
          %v1285 = vcombine.high %v1275, %v1275
          %v1286 = vcombine.high %v1282, %v1282
          %vm1295 = vcmask 122880
          %1296 = vst.msk [vmem:[%s337] sm:$0x1] %vm1295, %v1261
          %1297 = vst.msk [vmem:[%s337 + $0x1] sm:$0x1] %vm1295, %v1275
          %1298 = vst.msk [vmem:[%s337 + $0x2] sm:$0x1] %vm1295, %v1283
          %1299 = vst.msk [vmem:[%s337 + $0x3] sm:$0x1] %vm1295, %v1285
          %1300 = vst.msk [vmem:[%s337 + $0x4] sm:$0x1] %vm1295, %v1268
          %1301 = vst.msk [vmem:[%s337 + $0x5] sm:$0x1] %vm1295, %v1282
          %1302 = vst.msk [vmem:[%s337 + $0x6] sm:$0x1] %vm1295, %v1284
          %1303 = vst.msk [vmem:[%s337 + $0x7] sm:$0x1] %vm1295, %v1286
          %v1304 = vld [vmem:[#allocation4] sm:$0xff]
          %v1305 = vmul.f32 %v1304, %v1234
          %v1307 = vcombine.high %v1305, %v1305
          %v1309 = vunpack.c.l.s4 1966171168
          %v1310 = vunpack.c.0.s8 %v1309
          %v1311 = vlaneseq
          %v1312 = vshrl.u32 %v1311, 7
          %v1313 = vsub.s32 %v1310, %v1312
          %v1314 = vrot.slane %v1305, %v1313
          %v1316 = vunpack.c.l.s4 1966171168
          %v1317 = vunpack.c.0.s8 %v1316
          %v1318 = vlaneseq
          %v1319 = vshrl.u32 %v1318, 7
          %v1320 = vsub.s32 %v1317, %v1319
          %v1321 = vrot.slane %v1307, %v1320
          %v1322 = vcombine.high %v1314, %v1314
          %v1323 = vcombine.high %v1321, %v1321
          %v1325 = vunpack.c.l.s4 1966171168
          %v1326 = vunpack.c.0.s8 %v1325
          %v1327 = vlaneseq
          %v1328 = vshrl.u32 %v1327, 7
          %v1329 = vsub.s32 %v1326, %v1328
          %v1330 = vrot.slane %v1314, %v1329
          %v1332 = vunpack.c.l.s4 1966171168
          %v1333 = vunpack.c.0.s8 %v1332
          %v1334 = vlaneseq
          %v1335 = vshrl.u32 %v1334, 7
          %v1336 = vsub.s32 %v1333, %v1335
          %v1337 = vrot.slane %v1321, %v1336
          %v1339 = vunpack.c.l.s4 1966171168
          %v1340 = vunpack.c.0.s8 %v1339
          %v1341 = vlaneseq
          %v1342 = vshrl.u32 %v1341, 7
          %v1343 = vsub.s32 %v1340, %v1342
          %v1344 = vrot.slane %v1322, %v1343
          %v1346 = vunpack.c.l.s4 1966171168
          %v1347 = vunpack.c.0.s8 %v1346
          %v1348 = vlaneseq
          %v1349 = vshrl.u32 %v1348, 7
          %v1350 = vsub.s32 %v1347, %v1349
          %v1351 = vrot.slane %v1323, %v1350
          %v1352 = vcombine.high %v1330, %v1330
          %v1353 = vcombine.high %v1337, %v1337
          %v1354 = vcombine.high %v1344, %v1344
          %v1355 = vcombine.high %v1351, %v1351
          %1364 = vst.msk [vmem:[%s330] sm:$0x1] %vm1295, %v1330
          %1365 = vst.msk [vmem:[%s330 + $0x1] sm:$0x1] %vm1295, %v1344
          %1366 = vst.msk [vmem:[%s330 + $0x2] sm:$0x1] %vm1295, %v1352
          %1367 = vst.msk [vmem:[%s330 + $0x3] sm:$0x1] %vm1295, %v1354
          %1368 = vst.msk [vmem:[%s330 + $0x4] sm:$0x1] %vm1295, %v1337
          %1369 = vst.msk [vmem:[%s330 + $0x5] sm:$0x1] %vm1295, %v1351
          %1370 = vst.msk [vmem:[%s330 + $0x6] sm:$0x1] %vm1295, %v1353
          %1371 = vst.msk [vmem:[%s330 + $0x7] sm:$0x1] %vm1295, %v1355
        $region60: #{tpu_custom_call.1} parent=35 // pred_fallthru
          _
        %s1372 = sand.u32 %s146, 1
        %s1373 = scalar_lea.sflag [#allocation8], %s1372
        %s1374 = sand.u32 %s146, 1
        %s1375 = smul.addr %s1374, 8
        %s1376 = scalar_lea.vmem [#allocation14], %s1375
        %s1377 = sand.u32 %s172, 1
        %s1378 = scalar_lea.sflag [#allocation16], %s1377
        %s1379 = sand.u32 %s172, 1
        %s1380 = smul.addr %s1379, 8
        %s1381 = scalar_lea.vmem [#allocation15], %s1380
        // Predicated region
        $region61: #{tpu_custom_call.1} parent=35 // pred_check
          %p1382 = pneg %p156
        $region62: #{tpu_custom_call.1} parent=35 // pred_check_branch
          %1384 = sbr.rel (%p1382) target = $region64
        $region63: #{tpu_custom_call.1} parent=35 // pred_region
          %s1385 = smul.u32 8, %s34
          %s1387 = ssub.s32 128, 128
          %1388 = vsyncadd %s1373, %s1387
          %s1389 = smul.addr %s1385, 16
          %s1390 = scalar_lea.hbm %s4, %s1389
          %s1391 = sshll.u32 %s1376, 4
          %s1392 = int_to_ptr.vmem [resolvable:$true] %s1391
          %1397 = dma.vmem_to_hbm [thread:$0]  %s1392, 128, %s1390, %s1373, 16, 16, 1
        $region64: #{tpu_custom_call.1} parent=35 // pred_fallthru
          _
        // Predicated region
        $region65: #{tpu_custom_call.1} parent=35 // pred_check
          %p1398 = pneg %p182
        $region66: #{tpu_custom_call.1} parent=35 // pred_check_branch
          %1400 = sbr.rel (%p1398) target = $region68
        $region67: #{tpu_custom_call.1} parent=35 // pred_region
          %s1401 = smul.u32 8, %s34
          %s1403 = ssub.s32 128, 128
          %1404 = vsyncadd %s1378, %s1403
          %s1405 = smul.addr %s1401, 16
          %s1406 = scalar_lea.hbm %s5, %s1405
          %s1407 = sshll.u32 %s1381, 4
          %s1408 = int_to_ptr.vmem [resolvable:$true] %s1407
          %1413 = dma.vmem_to_hbm [thread:$0]  %s1408, 128, %s1406, %s1378, 16, 16, 1
        $region68: #{tpu_custom_call.1} parent=35 // pred_fallthru
          _
      $region36: #{tpu_custom_call.1} parent=5 // pred_fallthru
        _
      %p1414 = scmp.le.s32.totalorder 2, %s25
      // Predicated region
      $region69: #{tpu_custom_call.1} parent=5 // pred_check
        %p1415 = pneg %p1414
      $region70: #{tpu_custom_call.1} parent=5 // pred_check_branch
        %1417 = sbr.rel (%p1415) target = $region72
      $region71: #{tpu_custom_call.1} parent=5 // pred_region
        %s1418 = ssub.s32 %s25, 2
        // Predicated region
        $region73: #{tpu_custom_call.1} parent=71 // pred_check
          %p1419 = pneg %p162
        $region74: #{tpu_custom_call.1} parent=71 // pred_check_branch
          %1421 = sbr.rel (%p1419) target = $region76
        $region75: #{tpu_custom_call.1} parent=71 // pred_region
          %s1422 = sand.u32 %s147, 1
          %s1423 = scalar_lea.sflag [#allocation8], %s1422
          %s1424 = sand.u32 %s147, 1
          %s1425 = smul.addr %s1424, 8
          %s1426 = scalar_lea.vmem [#allocation14], %s1425
          %1427 = dma.done %s1423, 128
        $region76: #{tpu_custom_call.1} parent=71 // pred_fallthru
          _
        // Predicated region
        $region77: #{tpu_custom_call.1} parent=71 // pred_check
          %p1428 = pneg %p188
        $region78: #{tpu_custom_call.1} parent=71 // pred_check_branch
          %1430 = sbr.rel (%p1428) target = $region80
        $region79: #{tpu_custom_call.1} parent=71 // pred_region
          %s1431 = sand.u32 %s173, 1
          %s1432 = scalar_lea.sflag [#allocation16], %s1431
          %s1433 = sand.u32 %s173, 1
          %s1434 = smul.addr %s1433, 8
          %s1435 = scalar_lea.vmem [#allocation15], %s1434
          %1436 = dma.done %s1432, 128
        $region80: #{tpu_custom_call.1} parent=71 // pred_fallthru
          _
      $region72: #{tpu_custom_call.1} parent=5 // pred_fallthru
        _
    $region6: #{tpu_custom_call.1} parent=1 // loop_footer
      %s29 = sadd.s32 1, %s25
    $region7: #{tpu_custom_call.1} parent=1 // loop_footer_branch
      %24 = sbr.rel target = $region3
    $region8: #{tpu_custom_call.1} parent=1 // loop_exit
      _
    %1437 = vsyncpa [#allocation7], 1
    %s1438 = scalar_lea.sflag [#allocation7], 1
    %1439 = vsyncpa %s1438, 1
    %1440 = vsyncpa [#allocation10], 1
    %s1441 = scalar_lea.sflag [#allocation10], 1
    %1442 = vsyncpa %s1441, 1
    %1443 = vsyncpa [#allocation13], 1
    %1444 = vsyncpa [#allocation8], 1
    %s1445 = scalar_lea.sflag [#allocation8], 1
    %1446 = vsyncpa %s1445, 1
    %1447 = vsyncpa [#allocation16], 1
    %s1448 = scalar_lea.sflag [#allocation16], 1
    %1449 = vsyncpa %s1448, 1

</llo_original>
